<compile_context>
chip_gen: v7x
topology: tpu7x:2x2x1
jax: 0.10.0
libtpu: 0.0.40
codegen_flags: <defaults>
</compile_context>

<pallas_src>
import functools

import numpy as np
import jax
import jax.numpy as jnp
from jax import lax
from jax.experimental import pallas as pl
from jax.experimental.pallas import tpu as pltpu


def _round_up(x, m):
    return (x + m - 1) // m * m


def _leaky_relu(x, slope=0.2):
    return jnp.where(x >= 0, x, slope * x)


# Row offset at which the conv1 activation is staged inside the VMEM scratch.
# 8 keeps the big h1 store sublane-aligned; row (_H1_OFF - 1) and row (_H1_OFF + T1)
# hold the zero rows that implement conv2's p=1 time padding.
_H1_OFF = 8


def encoder_kernel(x_ref, w1_ref, b1_ref, w2_ref, b2_ref, w3_ref, b3_ref,
                   o_ref, h1_ref, *, t1_valid):
    # x_ref : (BB, Tp+2, Cin_p) f32   (time zero-padded: 1 left, 1+extra right)
    # w1_ref: (4*Cin_p, H_p) bf16     b1_ref: (1, H_p) f32
    # w2_ref: (4*H_p, O_p)   bf16     b2_ref: (1, O_p) f32
    # w3_ref: (O_p, O_p)     bf16     b3_ref: (1, O_p) f32
    # o_ref : (BB, T2p, O_p) f32
    # h1_ref: (BB, T1p + 2*_H1_OFF, H_p) f32 VMEM scratch
    BB = x_ref.shape[0]
    Cin = x_ref.shape[2]
    H = h1_ref.shape[2]
    T2 = o_ref.shape[1]
    O = o_ref.shape[2]
    T1 = 2 * T2

    # ---- conv1 (k=4, s=2, p=1): im2col -> one MXU matmul ----------------------------
    taps1 = [x_ref[:, pl.ds(k, T1, stride=2), :] for k in range(4)]   # 4 x (BB,T1,Cin)
    xcat = jnp.concatenate(taps1, axis=-1).reshape(BB * T1, 4 * Cin)  # lane-aligned
    acc1 = jnp.dot(xcat.astype(jnp.bfloat16), w1_ref[...],
                   preferred_element_type=jnp.float32)                # (BB*T1, H) f32
    h1 = _leaky_relu(acc1 + b1_ref[...]).reshape(BB, T1, H)           # Dropout -> id

    # Zero the time-padding tail: padded conv1 outputs at t >= real T1 would otherwise
    # leak x[T-1] into the last kept conv2 output (PyTorch sees a zero pad there).
    if t1_valid < T1:
        t_idx = lax.broadcasted_iota(jnp.int32, (BB, T1, H), 1)
        h1 = jnp.where(t_idx < t1_valid, h1, 0.0)

    # Stage conv1 activation in VMEM at a sublane-aligned offset with explicit zero
    # pad rows (conv2's p=1 padding).
    zero_row = jnp.zeros((BB, 1, H), h1_ref.dtype)
    h1_ref[:, pl.ds(_H1_OFF - 1, 1), :] = zero_row
    h1_ref[:, pl.ds(_H1_OFF + T1, 1), :] = zero_row
    h1_ref[:, pl.ds(_H1_OFF, T1), :] = h1.astype(h1_ref.dtype)        # aligned store

    # ---- conv2 (k=4, s=2, p=1): im2col -> one MXU matmul ----------------------------
    taps2 = [h1_ref[:, pl.ds(_H1_OFF - 1 + k, T2, stride=2), :] for k in range(4)]
    hcat = jnp.concatenate(taps2, axis=-1).reshape(BB * T2, 4 * H)    # (BB*T2, 4*H)
    acc2 = jnp.dot(hcat.astype(jnp.bfloat16), w2_ref[...],
                   preferred_element_type=jnp.float32)                # (BB*T2, O) f32
    h2 = _leaky_relu(acc2 + b2_ref[...])                              # Dropout -> id

    # ---- out_net: Linear(O, O) -------------------------------------------------------
    out = jnp.dot(h2.astype(jnp.bfloat16), w3_ref[...],
                  preferred_element_type=jnp.float32) + b3_ref[...]
    o_ref[...] = out.reshape(BB, T2, O).astype(o_ref.dtype)


def movement_conv_encoder(x, w1, b1, w2, b2, w3, b3, *, block_b=None,
                          vmem_budget_bytes=24 * 1024 * 1024):
    """x: (B, T, C_in) float32 -> (B, T_out, output_size) float32 (eval mode).

    w1: (4, C_in, H), w2: (4, H, O) per-tap conv weights (PyTorch Conv1d weight of
    shape (C_out, C_in, 4) transposed to (4, C_in, C_out)); w3: (O, O); biases 1-D.
    """
    B, T, Cin = x.shape
    if T < 4:
        raise ValueError("T must be >= 4 for two Conv1d(k=4, s=2, p=1) layers")
    H = w1.shape[2]
    O = w2.shape[2]

    # True PyTorch output lengths.
    T1 = (T + 2 - 4) // 2 + 1
    T2 = (T1 + 2 - 4) // 2 + 1

    # ---- alignment padding (all zeros, wrapper side) ---------------------------------
    Tp = _round_up(max(T, 32), 32)          # T1p % 16 == 0, T2p % 8 == 0
    T1p, T2p = Tp // 2, Tp // 4
    Cin_p = _round_up(Cin, 128)             # lane-aligned conv taps, K % 512 == 0
    H_p = _round_up(H, 128)
    O_p = _round_up(O, 128)                 # lane-dense output stores

    x_pad = jnp.pad(x.astype(jnp.float32),
                    ((0, 0), (1, Tp - T + 1), (0, Cin_p - Cin)))       # (B, Tp+2, Cin_p)
    w1c = jnp.pad(w1, ((0, 0), (0, Cin_p - Cin), (0, H_p - H))
                  ).reshape(4 * Cin_p, H_p).astype(jnp.bfloat16)
    w2c = jnp.pad(w2, ((0, 0), (0, H_p - H), (0, O_p - O))
                  ).reshape(4 * H_p, O_p).astype(jnp.bfloat16)
    w3c = jnp.pad(w3, ((0, O_p - O), (0, O_p - O))).astype(jnp.bfloat16)
    b1r = jnp.pad(b1, (0, H_p - H)).reshape(1, H_p).astype(jnp.float32)
    b2r = jnp.pad(b2, (0, O_p - O)).reshape(1, O_p).astype(jnp.float32)
    b3r = jnp.pad(b3, (0, O_p - O)).reshape(1, O_p).astype(jnp.float32)

    # ---- batch-block selection under an explicit VMEM budget -------------------------
    def vmem_estimate(bb):
        x_blk = bb * (Tp + 2) * Cin_p * 4          # double-buffered input block
        out_blk = bb * T2p * O_p * 4               # double-buffered output block
        h1_scr = bb * (T1p + 2 * _H1_OFF) * H_p * 4
        xcat = bb * T1p * 4 * Cin_p * 6            # f32 concat + bf16 operand temporaries
        hcat = bb * T2p * 4 * H_p * 6
        weights = (4 * Cin_p * H_p + 4 * H_p * O_p + O_p * O_p) * 2 \
            + (H_p + 2 * O_p) * 4
        return 2 * x_blk + 2 * out_blk + h1_scr + xcat + hcat + weights

    if block_b is None:
        divisors = [d for d in range(1, B + 1) if B % d == 0]
        cands = [d for d in divisors if vmem_estimate(d) <= vmem_budget_bytes] or [1]
        if B >= 2:                                      # keep >= 2 grid steps so both
            two = [d for d in cands if B // d >= 2]     # v7x TensorCores have work
            if two:
                cands = two
        even = [d for d in cands if (B // d) % 2 == 0]  # balance the two cores
        pool = even if even else cands
        big = [d for d in pool if d * T2p >= 256]       # fill the smallest matmul M dim
        block_b = min(big) if big else max(pool)
    block_b = max(1, min(block_b, B))
    while B % block_b:
        block_b -= 1
    n_blocks = B // block_b

    est = vmem_estimate(block_b)
    vmem_limit = int(max(32 * 1024 * 1024, min(2 * est, 48 * 1024 * 1024)))
    if est > vmem_limit:          # only reachable with an oversized explicit block_b
        vmem_limit = int(est + (8 << 20))

    flops = 2 * B * (T1p * 4 * Cin_p * H_p + T2p * 4 * H_p * O_p + T2p * O_p * O_p)
    bytes_accessed = (x_pad.size + B * T2p * O_p) * 4 \
        + (w1c.size + w2c.size + w3c.size) * 2 + (b1r.size + b2r.size + b3r.size) * 4
    cost = pl.CostEstimate(flops=flops, transcendentals=0,
                           bytes_accessed=bytes_accessed)

    kernel = functools.partial(encoder_kernel, t1_valid=T1)

    def build(weight_mode):
        wkw = {} if weight_mode is None else {"pipeline_mode": weight_mode}
        return pl.pallas_call(
            kernel,
            out_shape=jax.ShapeDtypeStruct((B, T2p, O_p), jnp.float32),
            grid=(n_blocks,),
            in_specs=[
                pl.BlockSpec((block_b, Tp + 2, Cin_p), lambda b: (b, 0, 0)),
                pl.BlockSpec((4 * Cin_p, H_p), lambda b: (0, 0), **wkw),
                pl.BlockSpec((1, H_p), lambda b: (0, 0), **wkw),
                pl.BlockSpec((4 * H_p, O_p), lambda b: (0, 0), **wkw),
                pl.BlockSpec((1, O_p), lambda b: (0, 0), **wkw),
                pl.BlockSpec((O_p, O_p), lambda b: (0, 0), **wkw),
                pl.BlockSpec((1, O_p), lambda b: (0, 0), **wkw),
            ],
            out_specs=pl.BlockSpec((block_b, T2p, O_p), lambda b: (b, 0, 0)),
            scratch_shapes=[
                pltpu.VMEM((block_b, T1p + 2 * _H1_OFF, H_p), jnp.float32)],
            compiler_params=pltpu.CompilerParams(
                dimension_semantics=("parallel",),
                vmem_limit_bytes=vmem_limit),
            cost_estimate=cost,
        )

    args = (x_pad, w1c, b1r, w2c, b2r, w3c, b3r)
    buffered = getattr(pl, "Buffered", None)
    if buffered is not None:
        try:
            # Constant index_map -> single-buffer the weights (saves a full VMEM copy).
            out_p = build(buffered(1))(*args)
        except Exception:
            out_p = build(None)(*args)
    else:
        out_p = build(None)(*args)

    return out_p[:, :T2, :O]


def reference_forward(x, w1, b1, w2, b2, w3, b3):
    """Pure-JAX reference using lax.conv (independent of the kernel math)."""
    xc = jnp.transpose(x, (0, 2, 1))                       # (B, Cin, T) == PyTorch NCW
    k1 = jnp.transpose(w1, (2, 1, 0))                      # (H, Cin, 4)
    y = lax.conv_general_dilated(xc, k1, (2,), [(1, 1)],
                                 dimension_numbers=("NCH", "OIH", "NCH"))
    y = _leaky_relu(y + b1.reshape(1, -1, 1))
    k2 = jnp.transpose(w2, (2, 1, 0))                      # (O, H, 4)
    y = lax.conv_general_dilated(y, k2, (2,), [(1, 1)],
                                 dimension_numbers=("NCH", "OIH", "NCH"))
    y = _leaky_relu(y + b2.reshape(1, -1, 1))
    y = jnp.transpose(y, (0, 2, 1))                        # (B, T2, O)
    return y @ w3 + b3.reshape(1, 1, -1)


def _make_params(key, input_size, hidden_size, output_size):
    k1, k2, k3, k4, k5, k6 = jax.random.split(key, 6)
    w1 = 0.1 * jax.random.normal(k1, (4, input_size, hidden_size), jnp.float32)
    b1 = 0.1 * jax.random.normal(k2, (hidden_size,), jnp.float32)
    w2 = 0.1 * jax.random.normal(k3, (4, hidden_size, output_size), jnp.float32)
    b2 = 0.1 * jax.random.normal(k4, (output_size,), jnp.float32)
    w3 = 0.1 * jax.random.normal(k5, (output_size, output_size), jnp.float32)
    b3 = 0.1 * jax.random.normal(k6, (output_size,), jnp.float32)
    return w1, b1, w2, b2, w3, b3


if __name__ == "__main__":
    input_size, hidden_size, output_size = 8, 16, 16
    key = jax.random.PRNGKey(0)
    kx1, kx2, kp = jax.random.split(key, 3)
    params = _make_params(kp, input_size, hidden_size, output_size)

    # Case 1: aligned time length (T % 32 == 0) -> no in-kernel tail masking,
    # auto block_b=4 -> grid of 2 batch blocks (both v7x TensorCores busy).
    B, T = 8, 32
    x = jax.random.normal(kx1, (B, T, input_size), jnp.float32)
    out = jax.block_until_ready(movement_conv_encoder(x, *params))
    ref = jax.block_until_ready(reference_forward(x, *params))
    assert out.shape == (B, T // 4, output_size), out.shape
    # bf16 MXU operands with f32 accumulation -> loosened tolerance vs f32 reference.
    np.testing.assert_allclose(np.asarray(out), np.asarray(ref), atol=2e-2, rtol=2e-2)

    # Case 2: unaligned time length (T=28 -> padded to 32) exercises the wrapper
    # padding + in-kernel conv1-tail masking + output slicing paths.
    B2, T2len = 8, 28
    x2 = jax.random.normal(kx2, (B2, T2len, input_size), jnp.float32)
    out2 = jax.block_until_ready(movement_conv_encoder(x2, *params))
    ref2 = jax.block_until_ready(reference_forward(x2, *params))
    assert out2.shape == ref2.shape, (out2.shape, ref2.shape)
    np.testing.assert_allclose(np.asarray(out2), np.asarray(ref2), atol=2e-2, rtol=2e-2)

    print("KERNEL_OK")
</pallas_src>

<mosaic_0001>
module attributes {stable_mosaic.version = 11 : i64} {
  func.func @encoder_kernel(%arg0: i32, %arg1: memref<4x34x128xf32, #tpu.memory_space<vmem>>, %arg2: memref<512x128xbf16, #tpu.memory_space<vmem>>, %arg3: memref<1x128xf32, #tpu.memory_space<vmem>>, %arg4: memref<512x128xbf16, #tpu.memory_space<vmem>>, %arg5: memref<1x128xf32, #tpu.memory_space<vmem>>, %arg6: memref<128x128xbf16, #tpu.memory_space<vmem>>, %arg7: memref<1x128xf32, #tpu.memory_space<vmem>>, %arg8: memref<4x8x128xf32, #tpu.memory_space<vmem>>, %arg9: memref<4x32x128xf32, #tpu.memory_space<vmem>>) attributes {dimension_semantics = [#tpu.dimension_semantics<parallel>], iteration_bounds = array<i64: 2>, scalar_prefetch = 0 : i64, scratch_operands = 1 : i64, tpu.core_type = #tpu.core_type<tc>, window_params = [{transform_indices = @transform_0, window_bounds = array<i64: 4, 34, 128>}, {pipeline_mode = #tpu.pipeline_mode<synchronous>, transform_indices = @transform_1, window_bounds = array<i64: 512, 128>}, {pipeline_mode = #tpu.pipeline_mode<synchronous>, transform_indices = @transform_2, window_bounds = array<i64: 1, 128>}, {pipeline_mode = #tpu.pipeline_mode<synchronous>, transform_indices = @transform_3, window_bounds = array<i64: 512, 128>}, {pipeline_mode = #tpu.pipeline_mode<synchronous>, transform_indices = @transform_4, window_bounds = array<i64: 1, 128>}, {pipeline_mode = #tpu.pipeline_mode<synchronous>, transform_indices = @transform_5, window_bounds = array<i64: 128, 128>}, {pipeline_mode = #tpu.pipeline_mode<synchronous>, transform_indices = @transform_6, window_bounds = array<i64: 1, 128>}, {transform_indices = @transform_7, window_bounds = array<i64: 4, 8, 128>}]} {
    %c0 = arith.constant 0 : index
    %c0_0 = arith.constant 0 : index
    %c0_1 = arith.constant 0 : index
    %0 = tpu.strided_load %arg1[%c0, %c0_0, %c0_1] {strides = array<i32: 1, 2, 1>} : memref<4x34x128xf32, #tpu.memory_space<vmem>>, vector<4x16x128xf32>
    %c0_2 = arith.constant 0 : index
    %c1 = arith.constant 1 : index
    %c0_3 = arith.constant 0 : index
    %1 = tpu.strided_load %arg1[%c0_2, %c1, %c0_3] {strides = array<i32: 1, 2, 1>} : memref<4x34x128xf32, #tpu.memory_space<vmem>>, vector<4x16x128xf32>
    %c0_4 = arith.constant 0 : index
    %c2 = arith.constant 2 : index
    %c0_5 = arith.constant 0 : index
    %2 = tpu.strided_load %arg1[%c0_4, %c2, %c0_5] {strides = array<i32: 1, 2, 1>} : memref<4x34x128xf32, #tpu.memory_space<vmem>>, vector<4x16x128xf32>
    %c0_6 = arith.constant 0 : index
    %c3 = arith.constant 3 : index
    %c0_7 = arith.constant 0 : index
    %3 = tpu.strided_load %arg1[%c0_6, %c3, %c0_7] {strides = array<i32: 1, 2, 1>} : memref<4x34x128xf32, #tpu.memory_space<vmem>>, vector<4x16x128xf32>
    %4 = tpu.concatenate %0, %1, %2, %3 in 2 : vector<4x16x128xf32>, vector<4x16x128xf32>, vector<4x16x128xf32>, vector<4x16x128xf32> -> vector<4x16x512xf32>
    %5 = vector.shape_cast %4 : vector<4x16x512xf32> to vector<64x512xf32>
    %6 = arith.truncf %5 : vector<64x512xf32> to vector<64x512xbf16>
    %c0_8 = arith.constant 0 : index
    %c0_9 = arith.constant 0 : index
    %7 = vector.load %arg2[%c0_8, %c0_9] : memref<512x128xbf16, #tpu.memory_space<vmem>>, vector<512x128xbf16>
    %cst = arith.constant dense<0.000000e+00> : vector<64x128xf32>
    %8 = tpu.matmul %6, %7, %cst {dimension_numbers = #tpu.dot_dimension_numbers<[1], [0], [0], [1], [0, 0, 1, 1], [], []>} : vector<64x512xbf16>, vector<512x128xbf16>, vector<64x128xf32> -> vector<64x128xf32>
    %c0_10 = arith.constant 0 : index
    %c0_11 = arith.constant 0 : index
    %9 = vector.load %arg3[%c0_10, %c0_11] : memref<1x128xf32, #tpu.memory_space<vmem>>, vector<1x128xf32>
    %10 = vector.broadcast %9 : vector<1x128xf32> to vector<64x128xf32>
    %11 = arith.addf %8, %10 : vector<64x128xf32>
    %cst_12 = arith.constant 0.000000e+00 : f32
    %12 = vector.broadcast %cst_12 : f32 to vector<64x128xf32>
    %13 = arith.cmpf oge, %11, %12 : vector<64x128xf32>
    %cst_13 = arith.constant 2.000000e-01 : f32
    %14 = vector.broadcast %cst_13 : f32 to vector<64x128xf32>
    %15 = arith.mulf %14, %11 : vector<64x128xf32>
    %16 = arith.select %13, %11, %15 : vector<64x128xi1>, vector<64x128xf32>
    %17 = vector.shape_cast %16 : vector<64x128xf32> to vector<4x16x128xf32>
    %cst_14 = arith.constant 0.000000e+00 : f32
    %18 = vector.broadcast %cst_14 : f32 to vector<4x1x128xf32>
    %c0_15 = arith.constant 0 : index
    %c7 = arith.constant 7 : index
    %c0_16 = arith.constant 0 : index
    %19 = vector.load %arg9[%c0_15, %c7, %c0_16] : memref<4x32x128xf32, #tpu.memory_space<vmem>>, vector<4x1x128xf32>
    tpu.vector_store %arg9[%c0_15, %c7, %c0_16], %18 {strides = array<i32>} : memref<4x32x128xf32, #tpu.memory_space<vmem>>, vector<4x1x128xf32>,
    %c0_17 = arith.constant 0 : index
    %c24 = arith.constant 24 : index
    %c0_18 = arith.constant 0 : index
    %20 = vector.load %arg9[%c0_17, %c24, %c0_18] : memref<4x32x128xf32, #tpu.memory_space<vmem>>, vector<4x1x128xf32>
    tpu.vector_store %arg9[%c0_17, %c24, %c0_18], %18 {strides = array<i32>} : memref<4x32x128xf32, #tpu.memory_space<vmem>>, vector<4x1x128xf32>,
    %c0_19 = arith.constant 0 : index
    %c8 = arith.constant 8 : index
    %c0_20 = arith.constant 0 : index
    %21 = vector.load %arg9[%c0_19, %c8, %c0_20] : memref<4x32x128xf32, #tpu.memory_space<vmem>>, vector<4x16x128xf32>
    tpu.vector_store %arg9[%c0_19, %c8, %c0_20], %17 {strides = array<i32>} : memref<4x32x128xf32, #tpu.memory_space<vmem>>, vector<4x16x128xf32>,
    %c0_21 = arith.constant 0 : index
    %c7_22 = arith.constant 7 : index
    %c0_23 = arith.constant 0 : index
    %22 = tpu.strided_load %arg9[%c0_21, %c7_22, %c0_23] {strides = array<i32: 1, 2, 1>} : memref<4x32x128xf32, #tpu.memory_space<vmem>>, vector<4x8x128xf32>
    %c0_24 = arith.constant 0 : index
    %c8_25 = arith.constant 8 : index
    %c0_26 = arith.constant 0 : index
    %23 = tpu.strided_load %arg9[%c0_24, %c8_25, %c0_26] {strides = array<i32: 1, 2, 1>} : memref<4x32x128xf32, #tpu.memory_space<vmem>>, vector<4x8x128xf32>
    %c0_27 = arith.constant 0 : index
    %c9 = arith.constant 9 : index
    %c0_28 = arith.constant 0 : index
    %24 = tpu.strided_load %arg9[%c0_27, %c9, %c0_28] {strides = array<i32: 1, 2, 1>} : memref<4x32x128xf32, #tpu.memory_space<vmem>>, vector<4x8x128xf32>
    %c0_29 = arith.constant 0 : index
    %c10 = arith.constant 10 : index
    %c0_30 = arith.constant 0 : index
    %25 = tpu.strided_load %arg9[%c0_29, %c10, %c0_30] {strides = array<i32: 1, 2, 1>} : memref<4x32x128xf32, #tpu.memory_space<vmem>>, vector<4x8x128xf32>
    %26 = tpu.concatenate %22, %23, %24, %25 in 2 : vector<4x8x128xf32>, vector<4x8x128xf32>, vector<4x8x128xf32>, vector<4x8x128xf32> -> vector<4x8x512xf32>
    %27 = vector.shape_cast %26 : vector<4x8x512xf32> to vector<32x512xf32>
    %28 = arith.truncf %27 : vector<32x512xf32> to vector<32x512xbf16>
    %c0_31 = arith.constant 0 : index
    %c0_32 = arith.constant 0 : index
    %29 = vector.load %arg4[%c0_31, %c0_32] : memref<512x128xbf16, #tpu.memory_space<vmem>>, vector<512x128xbf16>
    %cst_33 = arith.constant dense<0.000000e+00> : vector<32x128xf32>
    %30 = tpu.matmul %28, %29, %cst_33 {dimension_numbers = #tpu.dot_dimension_numbers<[1], [0], [0], [1], [0, 0, 1, 1], [], []>} : vector<32x512xbf16>, vector<512x128xbf16>, vector<32x128xf32> -> vector<32x128xf32>
    %c0_34 = arith.constant 0 : index
    %c0_35 = arith.constant 0 : index
    %31 = vector.load %arg5[%c0_34, %c0_35] : memref<1x128xf32, #tpu.memory_space<vmem>>, vector<1x128xf32>
    %32 = vector.broadcast %31 : vector<1x128xf32> to vector<32x128xf32>
    %33 = arith.addf %30, %32 : vector<32x128xf32>
    %cst_36 = arith.constant 0.000000e+00 : f32
    %34 = vector.broadcast %cst_36 : f32 to vector<32x128xf32>
    %35 = arith.cmpf oge, %33, %34 : vector<32x128xf32>
    %cst_37 = arith.constant 2.000000e-01 : f32
    %36 = vector.broadcast %cst_37 : f32 to vector<32x128xf32>
    %37 = arith.mulf %36, %33 : vector<32x128xf32>
    %38 = arith.select %35, %33, %37 : vector<32x128xi1>, vector<32x128xf32>
    %39 = arith.truncf %38 : vector<32x128xf32> to vector<32x128xbf16>
    %c0_38 = arith.constant 0 : index
    %c0_39 = arith.constant 0 : index
    %40 = vector.load %arg6[%c0_38, %c0_39] : memref<128x128xbf16, #tpu.memory_space<vmem>>, vector<128x128xbf16>
    %cst_40 = arith.constant dense<0.000000e+00> : vector<32x128xf32>
    %41 = tpu.matmul %39, %40, %cst_40 {dimension_numbers = #tpu.dot_dimension_numbers<[1], [0], [0], [1], [0, 0, 1, 1], [], []>} : vector<32x128xbf16>, vector<128x128xbf16>, vector<32x128xf32> -> vector<32x128xf32>
    %c0_41 = arith.constant 0 : index
    %c0_42 = arith.constant 0 : index
    %42 = vector.load %arg7[%c0_41, %c0_42] : memref<1x128xf32, #tpu.memory_space<vmem>>, vector<1x128xf32>
    %43 = vector.broadcast %42 : vector<1x128xf32> to vector<32x128xf32>
    %44 = arith.addf %41, %43 : vector<32x128xf32>
    %45 = vector.shape_cast %44 : vector<32x128xf32> to vector<4x8x128xf32>
    %c0_43 = arith.constant 0 : index
    %c0_44 = arith.constant 0 : index
    %c0_45 = arith.constant 0 : index
    %46 = vector.load %arg8[%c0_43, %c0_44, %c0_45] : memref<4x8x128xf32, #tpu.memory_space<vmem>>, vector<4x8x128xf32>
    tpu.vector_store %arg8[%c0_43, %c0_44, %c0_45], %45 {strides = array<i32>} : memref<4x8x128xf32, #tpu.memory_space<vmem>>, vector<4x8x128xf32>,
    return
  }
  func.func @transform_0(%arg0: i32) -> (i32, i32, i32) {
    %c0_i32 = arith.constant 0 : i32
    %c0_i32_0 = arith.constant 0 : i32
    %c0_i32_1 = arith.constant 0 : i32
    return %arg0, %c0_i32, %c0_i32_0 : i32, i32, i32
  }
  func.func @transform_1(%arg0: i32) -> (i32, i32) {
    %c0_i32 = arith.constant 0 : i32
    %c0_i32_0 = arith.constant 0 : i32
    %c0_i32_1 = arith.constant 0 : i32
    return %c0_i32, %c0_i32_0 : i32, i32
  }
  func.func @transform_2(%arg0: i32) -> (i32, i32) {
    %c0_i32 = arith.constant 0 : i32
    %c0_i32_0 = arith.constant 0 : i32
    %c0_i32_1 = arith.constant 0 : i32
    return %c0_i32, %c0_i32_0 : i32, i32
  }
  func.func @transform_3(%arg0: i32) -> (i32, i32) {
    %c0_i32 = arith.constant 0 : i32
    %c0_i32_0 = arith.constant 0 : i32
    %c0_i32_1 = arith.constant 0 : i32
    return %c0_i32, %c0_i32_0 : i32, i32
  }
  func.func @transform_4(%arg0: i32) -> (i32, i32) {
    %c0_i32 = arith.constant 0 : i32
    %c0_i32_0 = arith.constant 0 : i32
    %c0_i32_1 = arith.constant 0 : i32
    return %c0_i32, %c0_i32_0 : i32, i32
  }
  func.func @transform_5(%arg0: i32) -> (i32, i32) {
    %c0_i32 = arith.constant 0 : i32
    %c0_i32_0 = arith.constant 0 : i32
    %c0_i32_1 = arith.constant 0 : i32
    return %c0_i32, %c0_i32_0 : i32, i32
  }
  func.func @transform_6(%arg0: i32) -> (i32, i32) {
    %c0_i32 = arith.constant 0 : i32
    %c0_i32_0 = arith.constant 0 : i32
    %c0_i32_1 = arith.constant 0 : i32
    return %c0_i32, %c0_i32_0 : i32, i32
  }
  func.func @transform_7(%arg0: i32) -> (i32, i32, i32) {
    %c0_i32 = arith.constant 0 : i32
    %c0_i32_0 = arith.constant 0 : i32
    %c0_i32_1 = arith.constant 0 : i32
    return %arg0, %c0_i32, %c0_i32_0 : i32, i32, i32
  }
}

module attributes {stable_mosaic.version = 11 : i64} {
  func.func @encoder_kernel(%arg0: i32, %arg1: memref<4x34x128xf32, #tpu.memory_space<vmem>>, %arg2: memref<512x128xbf16, #tpu.memory_space<vmem>>, %arg3: memref<1x128xf32, #tpu.memory_space<vmem>>, %arg4: memref<512x128xbf16, #tpu.memory_space<vmem>>, %arg5: memref<1x128xf32, #tpu.memory_space<vmem>>, %arg6: memref<128x128xbf16, #tpu.memory_space<vmem>>, %arg7: memref<1x128xf32, #tpu.memory_space<vmem>>, %arg8: memref<4x8x128xf32, #tpu.memory_space<vmem>>, %arg9: memref<4x32x128xf32, #tpu.memory_space<vmem>>) attributes {dimension_semantics = [#tpu.dimension_semantics<parallel>], iteration_bounds = array<i64: 2>, scalar_prefetch = 0 : i64, scratch_operands = 1 : i64, tpu.core_type = #tpu.core_type<tc>, window_params = [{transform_indices = @transform_0, window_bounds = array<i64: 4, 34, 128>}, {pipeline_mode = #tpu.pipeline_mode<synchronous>, transform_indices = @transform_1, window_bounds = array<i64: 512, 128>}, {pipeline_mode = #tpu.pipeline_mode<synchronous>, transform_indices = @transform_2, window_bounds = array<i64: 1, 128>}, {pipeline_mode = #tpu.pipeline_mode<synchronous>, transform_indices = @transform_3, window_bounds = array<i64: 512, 128>}, {pipeline_mode = #tpu.pipeline_mode<synchronous>, transform_indices = @transform_4, window_bounds = array<i64: 1, 128>}, {pipeline_mode = #tpu.pipeline_mode<synchronous>, transform_indices = @transform_5, window_bounds = array<i64: 128, 128>}, {pipeline_mode = #tpu.pipeline_mode<synchronous>, transform_indices = @transform_6, window_bounds = array<i64: 1, 128>}, {transform_indices = @transform_7, window_bounds = array<i64: 4, 8, 128>}]} {
    %c0 = arith.constant 0 : index
    %c0_0 = arith.constant 0 : index
    %c0_1 = arith.constant 0 : index
    %0 = tpu.strided_load %arg1[%c0, %c0_0, %c0_1] {strides = array<i32: 1, 2, 1>} : memref<4x34x128xf32, #tpu.memory_space<vmem>>, vector<4x16x128xf32>
    %c0_2 = arith.constant 0 : index
    %c1 = arith.constant 1 : index
    %c0_3 = arith.constant 0 : index
    %1 = tpu.strided_load %arg1[%c0_2, %c1, %c0_3] {strides = array<i32: 1, 2, 1>} : memref<4x34x128xf32, #tpu.memory_space<vmem>>, vector<4x16x128xf32>
    %c0_4 = arith.constant 0 : index
    %c2 = arith.constant 2 : index
    %c0_5 = arith.constant 0 : index
    %2 = tpu.strided_load %arg1[%c0_4, %c2, %c0_5] {strides = array<i32: 1, 2, 1>} : memref<4x34x128xf32, #tpu.memory_space<vmem>>, vector<4x16x128xf32>
    %c0_6 = arith.constant 0 : index
    %c3 = arith.constant 3 : index
    %c0_7 = arith.constant 0 : index
    %3 = tpu.strided_load %arg1[%c0_6, %c3, %c0_7] {strides = array<i32: 1, 2, 1>} : memref<4x34x128xf32, #tpu.memory_space<vmem>>, vector<4x16x128xf32>
    %4 = tpu.concatenate %0, %1, %2, %3 in 2 : vector<4x16x128xf32>, vector<4x16x128xf32>, vector<4x16x128xf32>, vector<4x16x128xf32> -> vector<4x16x512xf32>
    %5 = vector.shape_cast %4 : vector<4x16x512xf32> to vector<64x512xf32>
    %6 = arith.truncf %5 : vector<64x512xf32> to vector<64x512xbf16>
    %c0_8 = arith.constant 0 : index
    %c0_9 = arith.constant 0 : index
    %7 = vector.load %arg2[%c0_8, %c0_9] : memref<512x128xbf16, #tpu.memory_space<vmem>>, vector<512x128xbf16>
    %cst = arith.constant dense<0.000000e+00> : vector<64x128xf32>
    %8 = tpu.matmul %6, %7, %cst {dimension_numbers = #tpu.dot_dimension_numbers<[1], [0], [0], [1], [0, 0, 1, 1], [], []>} : vector<64x512xbf16>, vector<512x128xbf16>, vector<64x128xf32> -> vector<64x128xf32>
    %c0_10 = arith.constant 0 : index
    %c0_11 = arith.constant 0 : index
    %9 = vector.load %arg3[%c0_10, %c0_11] : memref<1x128xf32, #tpu.memory_space<vmem>>, vector<1x128xf32>
    %10 = vector.broadcast %9 : vector<1x128xf32> to vector<64x128xf32>
    %11 = arith.addf %8, %10 : vector<64x128xf32>
    %cst_12 = arith.constant 0.000000e+00 : f32
    %12 = vector.broadcast %cst_12 : f32 to vector<64x128xf32>
    %13 = arith.cmpf oge, %11, %12 : vector<64x128xf32>
    %cst_13 = arith.constant 2.000000e-01 : f32
    %14 = vector.broadcast %cst_13 : f32 to vector<64x128xf32>
    %15 = arith.mulf %14, %11 : vector<64x128xf32>
    %16 = arith.select %13, %11, %15 : vector<64x128xi1>, vector<64x128xf32>
    %17 = vector.shape_cast %16 : vector<64x128xf32> to vector<4x16x128xf32>
    %cst_14 = arith.constant 0.000000e+00 : f32
    %18 = vector.broadcast %cst_14 : f32 to vector<4x1x128xf32>
    %c0_15 = arith.constant 0 : index
    %c7 = arith.constant 7 : index
    %c0_16 = arith.constant 0 : index
    %19 = vector.load %arg9[%c0_15, %c7, %c0_16] : memref<4x32x128xf32, #tpu.memory_space<vmem>>, vector<4x1x128xf32>
    tpu.vector_store %arg9[%c0_15, %c7, %c0_16], %18 {strides = array<i32>} : memref<4x32x128xf32, #tpu.memory_space<vmem>>, vector<4x1x128xf32>,
    %c0_17 = arith.constant 0 : index
    %c24 = arith.constant 24 : index
    %c0_18 = arith.constant 0 : index
    %20 = vector.load %arg9[%c0_17, %c24, %c0_18] : memref<4x32x128xf32, #tpu.memory_space<vmem>>, vector<4x1x128xf32>
    tpu.vector_store %arg9[%c0_17, %c24, %c0_18], %18 {strides = array<i32>} : memref<4x32x128xf32, #tpu.memory_space<vmem>>, vector<4x1x128xf32>,
    %c0_19 = arith.constant 0 : index
    %c8 = arith.constant 8 : index
    %c0_20 = arith.constant 0 : index
    %21 = vector.load %arg9[%c0_19, %c8, %c0_20] : memref<4x32x128xf32, #tpu.memory_space<vmem>>, vector<4x16x128xf32>
    tpu.vector_store %arg9[%c0_19, %c8, %c0_20], %17 {strides = array<i32>} : memref<4x32x128xf32, #tpu.memory_space<vmem>>, vector<4x16x128xf32>,
    %c0_21 = arith.constant 0 : index
    %c7_22 = arith.constant 7 : index
    %c0_23 = arith.constant 0 : index
    %22 = tpu.strided_load %arg9[%c0_21, %c7_22, %c0_23] {strides = array<i32: 1, 2, 1>} : memref<4x32x128xf32, #tpu.memory_space<vmem>>, vector<4x8x128xf32>
    %c0_24 = arith.constant 0 : index
    %c8_25 = arith.constant 8 : index
    %c0_26 = arith.constant 0 : index
    %23 = tpu.strided_load %arg9[%c0_24, %c8_25, %c0_26] {strides = array<i32: 1, 2, 1>} : memref<4x32x128xf32, #tpu.memory_space<vmem>>, vector<4x8x128xf32>
    %c0_27 = arith.constant 0 : index
    %c9 = arith.constant 9 : index
    %c0_28 = arith.constant 0 : index
    %24 = tpu.strided_load %arg9[%c0_27, %c9, %c0_28] {strides = array<i32: 1, 2, 1>} : memref<4x32x128xf32, #tpu.memory_space<vmem>>, vector<4x8x128xf32>
    %c0_29 = arith.constant 0 : index
    %c10 = arith.constant 10 : index
    %c0_30 = arith.constant 0 : index
    %25 = tpu.strided_load %arg9[%c0_29, %c10, %c0_30] {strides = array<i32: 1, 2, 1>} : memref<4x32x128xf32, #tpu.memory_space<vmem>>, vector<4x8x128xf32>
    %26 = tpu.concatenate %22, %23, %24, %25 in 2 : vector<4x8x128xf32>, vector<4x8x128xf32>, vector<4x8x128xf32>, vector<4x8x128xf32> -> vector<4x8x512xf32>
    %27 = vector.shape_cast %26 : vector<4x8x512xf32> to vector<32x512xf32>
    %28 = arith.truncf %27 : vector<32x512xf32> to vector<32x512xbf16>
    %c0_31 = arith.constant 0 : index
    %c0_32 = arith.constant 0 : index
    %29 = vector.load %arg4[%c0_31, %c0_32] : memref<512x128xbf16, #tpu.memory_space<vmem>>, vector<512x128xbf16>
    %cst_33 = arith.constant dense<0.000000e+00> : vector<32x128xf32>
    %30 = tpu.matmul %28, %29, %cst_33 {dimension_numbers = #tpu.dot_dimension_numbers<[1], [0], [0], [1], [0, 0, 1, 1], [], []>} : vector<32x512xbf16>, vector<512x128xbf16>, vector<32x128xf32> -> vector<32x128xf32>
    %c0_34 = arith.constant 0 : index
    %c0_35 = arith.constant 0 : index
    %31 = vector.load %arg5[%c0_34, %c0_35] : memref<1x128xf32, #tpu.memory_space<vmem>>, vector<1x128xf32>
    %32 = vector.broadcast %31 : vector<1x128xf32> to vector<32x128xf32>
    %33 = arith.addf %30, %32 : vector<32x128xf32>
    %cst_36 = arith.constant 0.000000e+00 : f32
    %34 = vector.broadcast %cst_36 : f32 to vector<32x128xf32>
    %35 = arith.cmpf oge, %33, %34 : vector<32x128xf32>
    %cst_37 = arith.constant 2.000000e-01 : f32
    %36 = vector.broadcast %cst_37 : f32 to vector<32x128xf32>
    %37 = arith.mulf %36, %33 : vector<32x128xf32>
    %38 = arith.select %35, %33, %37 : vector<32x128xi1>, vector<32x128xf32>
    %39 = arith.truncf %38 : vector<32x128xf32> to vector<32x128xbf16>
    %c0_38 = arith.constant 0 : index
    %c0_39 = arith.constant 0 : index
    %40 = vector.load %arg6[%c0_38, %c0_39] : memref<128x128xbf16, #tpu.memory_space<vmem>>, vector<128x128xbf16>
    %cst_40 = arith.constant dense<0.000000e+00> : vector<32x128xf32>
    %41 = tpu.matmul %39, %40, %cst_40 {dimension_numbers = #tpu.dot_dimension_numbers<[1], [0], [0], [1], [0, 0, 1, 1], [], []>} : vector<32x128xbf16>, vector<128x128xbf16>, vector<32x128xf32> -> vector<32x128xf32>
    %c0_41 = arith.constant 0 : index
    %c0_42 = arith.constant 0 : index
    %42 = vector.load %arg7[%c0_41, %c0_42] : memref<1x128xf32, #tpu.memory_space<vmem>>, vector<1x128xf32>
    %43 = vector.broadcast %42 : vector<1x128xf32> to vector<32x128xf32>
    %44 = arith.addf %41, %43 : vector<32x128xf32>
    %45 = vector.shape_cast %44 : vector<32x128xf32> to vector<4x8x128xf32>
    %c0_43 = arith.constant 0 : index
    %c0_44 = arith.constant 0 : index
    %c0_45 = arith.constant 0 : index
    %46 = vector.load %arg8[%c0_43, %c0_44, %c0_45] : memref<4x8x128xf32, #tpu.memory_space<vmem>>, vector<4x8x128xf32>
    tpu.vector_store %arg8[%c0_43, %c0_44, %c0_45], %45 {strides = array<i32>} : memref<4x8x128xf32, #tpu.memory_space<vmem>>, vector<4x8x128xf32>,
    return
  }
  func.func @transform_0(%arg0: i32) -> (i32, i32, i32) {
    %c0_i32 = arith.constant 0 : i32
    %c0_i32_0 = arith.constant 0 : i32
    %c0_i32_1 = arith.constant 0 : i32
    return %arg0, %c0_i32, %c0_i32_0 : i32, i32, i32
  }
  func.func @transform_1(%arg0: i32) -> (i32, i32) {
    %c0_i32 = arith.constant 0 : i32
    %c0_i32_0 = arith.constant 0 : i32
    %c0_i32_1 = arith.constant 0 : i32
    return %c0_i32, %c0_i32_0 : i32, i32
  }
  func.func @transform_2(%arg0: i32) -> (i32, i32) {
    %c0_i32 = arith.constant 0 : i32
    %c0_i32_0 = arith.constant 0 : i32
    %c0_i32_1 = arith.constant 0 : i32
    return %c0_i32, %c0_i32_0 : i32, i32
  }
  func.func @transform_3(%arg0: i32) -> (i32, i32) {
    %c0_i32 = arith.constant 0 : i32
    %c0_i32_0 = arith.constant 0 : i32
    %c0_i32_1 = arith.constant 0 : i32
    return %c0_i32, %c0_i32_0 : i32, i32
  }
  func.func @transform_4(%arg0: i32) -> (i32, i32) {
    %c0_i32 = arith.constant 0 : i32
    %c0_i32_0 = arith.constant 0 : i32
    %c0_i32_1 = arith.constant 0 : i32
    return %c0_i32, %c0_i32_0 : i32, i32
  }
  func.func @transform_5(%arg0: i32) -> (i32, i32) {
    %c0_i32 = arith.constant 0 : i32
    %c0_i32_0 = arith.constant 0 : i32
    %c0_i32_1 = arith.constant 0 : i32
    return %c0_i32, %c0_i32_0 : i32, i32
  }
  func.func @transform_6(%arg0: i32) -> (i32, i32) {
    %c0_i32 = arith.constant 0 : i32
    %c0_i32_0 = arith.constant 0 : i32
    %c0_i32_1 = arith.constant 0 : i32
    return %c0_i32, %c0_i32_0 : i32, i32
  }
  func.func @transform_7(%arg0: i32) -> (i32, i32, i32) {
    %c0_i32 = arith.constant 0 : i32
    %c0_i32_0 = arith.constant 0 : i32
    %c0_i32_1 = arith.constant 0 : i32
    return %arg0, %c0_i32, %c0_i32_0 : i32, i32, i32
  }
}

</mosaic_0001>

<llo_original>
// kernel: tpu_custom_call.1
$region0: #{tpu_custom_call.1}
  #allocation0 [shape = 'u32[]', space=smem, size = 0x4, offset = 0x4, fixed_abs, tag = 'smem constant byte address 0x4 - core index']
  #allocation1 [shape = 'u32[144,128]{1,0:T(1,128)}', space=vmem, size = 0x12000, scoped, tag = 'internal scratch']
  #allocation2 [shape = 'f32[4,32,128]{2,1,0:T(8,128)}', space=vmem, size = 0x10000, scoped, tag = 'scratch operand']
  %s0 = inlined_call_operand.vmem [shape: f32[8,34,128], index: 0, kind: input, shape index: {}]
  %s1 = inlined_call_operand.vmem [shape: bf16[512,128], index: 1, kind: input, shape index: {}]
  %s2 = inlined_call_operand.vmem [shape: f32[1,128], index: 2, kind: input, shape index: {}]
  %s3 = inlined_call_operand.vmem [shape: bf16[512,128], index: 3, kind: input, shape index: {}]
  %s4 = inlined_call_operand.vmem [shape: f32[1,128], index: 4, kind: input, shape index: {}]
  %s5 = inlined_call_operand.vmem [shape: bf16[128,128], index: 5, kind: input, shape index: {}]
  %s6 = inlined_call_operand.vmem [shape: f32[1,128], index: 6, kind: input, shape index: {}]
  %s7 = inlined_call_operand.hbm [shape: f32[8,8,128], index: 7, kind: output, shape index: {}]
  %s8 = sld [smem:[#allocation0]]
  $region61: #{tpu_custom_call.1} parent=0
    _
  %s10 = ssub.s32 1, %s8
  %s11 = scalar_select 0, %s10, %s8
  $region1: #{tpu_custom_call.1} parent=0
    #allocation3 [shape = 'u8[32768]{0}', space=vmem, size = 0x8000, scoped, tag = 'output window, operand 0']
    #allocation4 [shape = 's32[2]{0}', space=sflag, size = 0x8, scoped, tag = 'scoped memory for tpu_custom_call.1']
    %12 = vsyncpa [#allocation4], 0
    %s13 = scalar_lea.sflag [#allocation4], 1
    %14 = vsyncpa %s13, 0
    loop: start=0, step=1, limit=4
    $region2: #{tpu_custom_call.1} parent=1 // loop_pre_header
      _
    $region3: #{tpu_custom_call.1} parent=1 // loop_header
      %s16 = sphi 0, %s20
      %p17 = scmp.ge.s32.totalorder %s16, 4
      %s26 = sphi 0, %s28
      %s29 = sphi 0, %s26
      %s30 = sphi 0, %s29
      %s46 = sphi 0, %s30
      %s50 = sphi 0, %s50
      %s52 = sphi 0, %s50
      %s53 = sphi 0, %s52
      %s67 = sphi 0, %s53
      %s71 = sphi 0, %s71
      %s73 = sphi 0, %s71
      %s74 = sphi 0, %s73
      %s88 = sphi 0, %s74
      %s92 = sphi 0, %s92
      %s94 = sphi 0, %s92
      %s95 = sphi 0, %s94
      %s109 = sphi 0, %s95
      %s113 = sphi 0, %s113
      %s115 = sphi 0, %s113
      %s116 = sphi 0, %s115
      %s130 = sphi 0, %s116
      %s134 = sphi 0, %s134
      %s136 = sphi 0, %s134
      %s137 = sphi 0, %s136
      %s151 = sphi 0, %s137
      %s155 = sphi 0, %s155
      %s157 = sphi 0, %s155
      %s158 = sphi 0, %s157
      %s172 = sphi 0, %s158
      %s178 = sphi 0, %s180
      %s181 = sphi 0, %s178
      %s182 = sphi 0, %s181
      %s198 = sphi 0, %s182
    $region4: #{tpu_custom_call.1} parent=1 // loop_header_branch
      %19 = sbr.rel (%p17) target = $region8
    $region5: #{tpu_custom_call.1} parent=1 // loop_body
      %s21 = ssub.s32 %s16, 1
      %s22 = ssub.s32 %s16, 2
      %s23 = sadd.s32 %s16, 1
      %s24 = ssub.s32 %s16, %s23
      %p25 = scmp.eq.s32.totalorder %s24, 0
      %s27 = sadd.s32 %s26, 1
      %s28 = scalar_select %p25, %s26, %s27
      %p31 = pneg %p25
      %p32 = scmp.eq.s32.totalorder %s16, 1
      %p33 = por %p31, %p32
      %p34 = scmp.ne.s32.totalorder %s26, %s29
      %p35 = scmp.eq.s32.totalorder %s16, 0
      %p36 = por %p34, %p35
      %p37 = scmp.ne.s32.totalorder %s26, %s29
      %p38 = scmp.eq.s32.totalorder %s21, 1
      %p39 = por %p37, %p38
      %p40 = scmp.ne.s32.totalorder %s29, %s30
      %p41 = scmp.eq.s32.totalorder %s21, 0
      %p42 = por %p40, %p41
      %p43 = scmp.ne.s32.totalorder %s29, %s30
      %p44 = scmp.eq.s32.totalorder %s22, 1
      %p45 = por %p43, %p44
      %p47 = scmp.ne.s32.totalorder %s30, %s46
      %p48 = scmp.eq.s32.totalorder %s22, 0
      %p49 = por %p47, %p48
      %s51 = sadd.s32 %s50, 1
      %p54 = scmp.eq.s32.totalorder %s16, 1
      %p55 = scmp.ne.s32.totalorder %s50, %s52
      %p56 = scmp.eq.s32.totalorder %s16, 0
      %p57 = por %p55, %p56
      %p58 = scmp.ne.s32.totalorder %s50, %s52
      %p59 = scmp.eq.s32.totalorder %s21, 1
      %p60 = por %p58, %p59
      %p61 = scmp.ne.s32.totalorder %s52, %s53
      %p62 = scmp.eq.s32.totalorder %s21, 0
      %p63 = por %p61, %p62
      %p64 = scmp.ne.s32.totalorder %s52, %s53
      %p65 = scmp.eq.s32.totalorder %s22, 1
      %p66 = por %p64, %p65
      %p68 = scmp.ne.s32.totalorder %s53, %s67
      %p69 = scmp.eq.s32.totalorder %s22, 0
      %p70 = por %p68, %p69
      %s72 = sadd.s32 %s71, 1
      %p75 = scmp.eq.s32.totalorder %s16, 1
      %p76 = scmp.ne.s32.totalorder %s71, %s73
      %p77 = scmp.eq.s32.totalorder %s16, 0
      %p78 = por %p76, %p77
      %p79 = scmp.ne.s32.totalorder %s71, %s73
      %p80 = scmp.eq.s32.totalorder %s21, 1
      %p81 = por %p79, %p80
      %p82 = scmp.ne.s32.totalorder %s73, %s74
      %p83 = scmp.eq.s32.totalorder %s21, 0
      %p84 = por %p82, %p83
      %p85 = scmp.ne.s32.totalorder %s73, %s74
      %p86 = scmp.eq.s32.totalorder %s22, 1
      %p87 = por %p85, %p86
      %p89 = scmp.ne.s32.totalorder %s74, %s88
      %p90 = scmp.eq.s32.totalorder %s22, 0
      %p91 = por %p89, %p90
      %s93 = sadd.s32 %s92, 1
      %p96 = scmp.eq.s32.totalorder %s16, 1
      %p97 = scmp.ne.s32.totalorder %s92, %s94
      %p98 = scmp.eq.s32.totalorder %s16, 0
      %p99 = por %p97, %p98
      %p100 = scmp.ne.s32.totalorder %s92, %s94
      %p101 = scmp.eq.s32.totalorder %s21, 1
      %p102 = por %p100, %p101
      %p103 = scmp.ne.s32.totalorder %s94, %s95
      %p104 = scmp.eq.s32.totalorder %s21, 0
      %p105 = por %p103, %p104
      %p106 = scmp.ne.s32.totalorder %s94, %s95
      %p107 = scmp.eq.s32.totalorder %s22, 1
      %p108 = por %p106, %p107
      %p110 = scmp.ne.s32.totalorder %s95, %s109
      %p111 = scmp.eq.s32.totalorder %s22, 0
      %p112 = por %p110, %p111
      %s114 = sadd.s32 %s113, 1
      %p117 = scmp.eq.s32.totalorder %s16, 1
      %p118 = scmp.ne.s32.totalorder %s113, %s115
      %p119 = scmp.eq.s32.totalorder %s16, 0
      %p120 = por %p118, %p119
      %p121 = scmp.ne.s32.totalorder %s113, %s115
      %p122 = scmp.eq.s32.totalorder %s21, 1
      %p123 = por %p121, %p122
      %p124 = scmp.ne.s32.totalorder %s115, %s116
      %p125 = scmp.eq.s32.totalorder %s21, 0
      %p126 = por %p124, %p125
      %p127 = scmp.ne.s32.totalorder %s115, %s116
      %p128 = scmp.eq.s32.totalorder %s22, 1
      %p129 = por %p127, %p128
      %p131 = scmp.ne.s32.totalorder %s116, %s130
      %p132 = scmp.eq.s32.totalorder %s22, 0
      %p133 = por %p131, %p132
      %s135 = sadd.s32 %s134, 1
      %p138 = scmp.eq.s32.totalorder %s16, 1
      %p139 = scmp.ne.s32.totalorder %s134, %s136
      %p140 = scmp.eq.s32.totalorder %s16, 0
      %p141 = por %p139, %p140
      %p142 = scmp.ne.s32.totalorder %s134, %s136
      %p143 = scmp.eq.s32.totalorder %s21, 1
      %p144 = por %p142, %p143
      %p145 = scmp.ne.s32.totalorder %s136, %s137
      %p146 = scmp.eq.s32.totalorder %s21, 0
      %p147 = por %p145, %p146
      %p148 = scmp.ne.s32.totalorder %s136, %s137
      %p149 = scmp.eq.s32.totalorder %s22, 1
      %p150 = por %p148, %p149
      %p152 = scmp.ne.s32.totalorder %s137, %s151
      %p153 = scmp.eq.s32.totalorder %s22, 0
      %p154 = por %p152, %p153
      %s156 = sadd.s32 %s155, 1
      %p159 = scmp.eq.s32.totalorder %s16, 1
      %p160 = scmp.ne.s32.totalorder %s155, %s157
      %p161 = scmp.eq.s32.totalorder %s16, 0
      %p162 = por %p160, %p161
      %p163 = scmp.ne.s32.totalorder %s155, %s157
      %p164 = scmp.eq.s32.totalorder %s21, 1
      %p165 = por %p163, %p164
      %p166 = scmp.ne.s32.totalorder %s157, %s158
      %p167 = scmp.eq.s32.totalorder %s21, 0
      %p168 = por %p166, %p167
      %p169 = scmp.ne.s32.totalorder %s157, %s158
      %p170 = scmp.eq.s32.totalorder %s22, 1
      %p171 = por %p169, %p170
      %p173 = scmp.ne.s32.totalorder %s158, %s172
      %p174 = scmp.eq.s32.totalorder %s22, 0
      %p175 = por %p173, %p174
      %s176 = ssub.s32 %s16, %s23
      %p177 = scmp.eq.s32.totalorder %s176, 0
      %s179 = sadd.s32 %s178, 1
      %s180 = scalar_select %p177, %s178, %s179
      %p183 = pneg %p177
      %p184 = scmp.eq.s32.totalorder %s16, 1
      %p185 = por %p183, %p184
      %p186 = scmp.ne.s32.totalorder %s178, %s181
      %p187 = scmp.eq.s32.totalorder %s16, 0
      %p188 = por %p186, %p187
      %p189 = scmp.ne.s32.totalorder %s178, %s181
      %p190 = scmp.eq.s32.totalorder %s21, 1
      %p191 = por %p189, %p190
      %p192 = scmp.ne.s32.totalorder %s181, %s182
      %p193 = scmp.eq.s32.totalorder %s21, 0
      %p194 = por %p192, %p193
      %p195 = scmp.ne.s32.totalorder %s181, %s182
      %p196 = scmp.eq.s32.totalorder %s22, 1
      %p197 = por %p195, %p196
      %p199 = scmp.ne.s32.totalorder %s182, %s198
      %p200 = scmp.eq.s32.totalorder %s22, 0
      %p201 = por %p199, %p200
      %p202 = scmp.le.s32.totalorder 1, %s16
      %p203 = scmp.lt.s32.totalorder %s16, 3
      %p204 = pnand %p202, %p203
      %p205 = pneg %p204
      // Predicated region
      $region9: #{tpu_custom_call.1} parent=5 // pred_check
        _
      $region10: #{tpu_custom_call.1} parent=5 // pred_check_branch
        %207 = sbr.rel (%p204) target = $region12
      $region11: #{tpu_custom_call.1} parent=5 // pred_region
        %s208 = ssub.s32 %s16, 1
        // Predicated region
        $region13: #{tpu_custom_call.1} parent=11 // pred_check
          %p209 = pneg %p63
        $region14: #{tpu_custom_call.1} parent=11 // pred_check_branch
          %211 = sbr.rel (%p209) target = $region16
        $region15: #{tpu_custom_call.1} parent=11 // pred_region
          _
        $region16: #{tpu_custom_call.1} parent=11 // pred_fallthru
          _
        // Predicated region
        $region17: #{tpu_custom_call.1} parent=11 // pred_check
          %p212 = pneg %p84
        $region18: #{tpu_custom_call.1} parent=11 // pred_check_branch
          %214 = sbr.rel (%p212) target = $region20
        $region19: #{tpu_custom_call.1} parent=11 // pred_region
          _
        $region20: #{tpu_custom_call.1} parent=11 // pred_fallthru
          _
        // Predicated region
        $region21: #{tpu_custom_call.1} parent=11 // pred_check
          %p215 = pneg %p105
        $region22: #{tpu_custom_call.1} parent=11 // pred_check_branch
          %217 = sbr.rel (%p215) target = $region24
        $region23: #{tpu_custom_call.1} parent=11 // pred_region
          _
        $region24: #{tpu_custom_call.1} parent=11 // pred_fallthru
          _
        // Predicated region
        $region25: #{tpu_custom_call.1} parent=11 // pred_check
          %p218 = pneg %p126
        $region26: #{tpu_custom_call.1} parent=11 // pred_check_branch
          %220 = sbr.rel (%p218) target = $region28
        $region27: #{tpu_custom_call.1} parent=11 // pred_region
          _
        $region28: #{tpu_custom_call.1} parent=11 // pred_fallthru
          _
        // Predicated region
        $region29: #{tpu_custom_call.1} parent=11 // pred_check
          %p221 = pneg %p147
        $region30: #{tpu_custom_call.1} parent=11 // pred_check_branch
          %223 = sbr.rel (%p221) target = $region32
        $region31: #{tpu_custom_call.1} parent=11 // pred_region
          _
        $region32: #{tpu_custom_call.1} parent=11 // pred_fallthru
          _
        // Predicated region
        $region33: #{tpu_custom_call.1} parent=11 // pred_check
          %p224 = pneg %p168
        $region34: #{tpu_custom_call.1} parent=11 // pred_check_branch
          %226 = sbr.rel (%p224) target = $region36
        $region35: #{tpu_custom_call.1} parent=11 // pred_region
          _
        $region36: #{tpu_custom_call.1} parent=11 // pred_fallthru
          _
      $region12: #{tpu_custom_call.1} parent=5 // pred_fallthru
        _
      %p227 = scmp.lt.s32.totalorder %s16, 2
      // Predicated region
      $region37: #{tpu_custom_call.1} parent=5 // pred_check
        %p228 = pneg %p227
      $region38: #{tpu_custom_call.1} parent=5 // pred_check_branch
        %230 = sbr.rel (%p228) target = $region40
      $region39: #{tpu_custom_call.1} parent=5 // pred_region
        // Predicated region
        $region41: #{tpu_custom_call.1} parent=39 // pred_check
          %p231 = pneg %p36
        $region42: #{tpu_custom_call.1} parent=39 // pred_check_branch
          %233 = sbr.rel (%p231) target = $region44
        $region43: #{tpu_custom_call.1} parent=39 // pred_region
          %s234 = smul.u32 4, %s16
          %p235 = scmp.lt.s32.totalorder %s234, 7
          %s236 = scalar_select %p235, %s234, 7
          %s237 = smul.addr %s236, 5
          %s238 = smul.addr %s237, 8
          %s239 = scalar_lea.vmem %s0, %s238
          %s240 = smul.u32 4, %s16
        $region44: #{tpu_custom_call.1} parent=39 // pred_fallthru
          _
      $region40: #{tpu_custom_call.1} parent=5 // pred_fallthru
        _
      %p241 = scmp.le.s32.totalorder 1, %s16
      %p242 = scmp.lt.s32.totalorder %s16, 3
      %p243 = pnand %p241, %p242
      %p244 = pneg %p243
      // Predicated region
      $region45: #{tpu_custom_call.1} parent=5 // pred_check
        _
      $region46: #{tpu_custom_call.1} parent=5 // pred_check_branch
        %246 = sbr.rel (%p243) target = $region48
      $region47: #{tpu_custom_call.1} parent=5 // pred_region
        %s247 = ssub.s32 %s16, 1
        %s248 = smul.u32 4, %s21
        %p249 = scmp.lt.s32.totalorder %s248, 7
        %s250 = scalar_select %p249, %s248, 7
        %s251 = smul.addr %s250, 5
        %s252 = smul.addr %s251, 8
        %s253 = scalar_lea.vmem %s0, %s252
        %p254 = pneg %p42
        %p255 = pneg %p39
        %p256 = pneg %p63
        %p257 = pneg %p60
        %p258 = pneg %p84
        %p259 = pneg %p81
        %p260 = pneg %p105
        %p261 = pneg %p102
        %p262 = pneg %p126
        %p263 = pneg %p123
        %p264 = pneg %p147
        %p265 = pneg %p144
        %p266 = pneg %p168
        %p267 = pneg %p165
        %p268 = pneg %p194
        %p269 = pneg %p191
        %s270 = sand.u32 %s181, 1
        %s271 = scalar_lea.sflag [#allocation4], %s270
        %s272 = sand.u32 %s181, 1
        %s273 = smul.addr %s272, 32
        %s274 = scalar_lea.vmem [#allocation3], %s273
        %s275 = smul.u32 4, %s21
        %p276 = scmp.lt.s32.totalorder %s275, 7
        %s277 = scalar_select %p276, %s275, 7
        %s278 = smul.addr %s277, 5
        %s279 = smul.addr %s278, 8
        %s280 = scalar_lea.vmem %s0, %s279
        %s281 = smul.u32 4, %s21
        %s282 = smul.u32 4, %s21
        %v284 = vld [vmem:[%s280] ss:$2 sm:$0xff]
        %s285 = scalar_lea.vmem %s280, 16
        %v286 = vld [vmem:[%s285] ss:$2 sm:$0xff]
        %s287 = scalar_lea.vmem %s280, 40
        %v288 = vld [vmem:[%s287] ss:$2 sm:$0xff]
        %s289 = scalar_lea.vmem %s280, 56
        %v290 = vld [vmem:[%s289] ss:$2 sm:$0xff]
        %s291 = scalar_lea.vmem %s280, 80
        %v292 = vld [vmem:[%s291] ss:$2 sm:$0xff]
        %s293 = scalar_lea.vmem %s280, 96
        %v294 = vld [vmem:[%s293] ss:$2 sm:$0xff]
        %s295 = scalar_lea.vmem %s280, 120
        %v296 = vld [vmem:[%s295] ss:$2 sm:$0xff]
        %s297 = scalar_lea.vmem %s280, 136
        %v298 = vld [vmem:[%s297] ss:$2 sm:$0xff]
        %s299 = scalar_lea.vmem %s280, 1
        %v300 = vld [vmem:[%s299] ss:$2 sm:$0xff]
        %s301 = scalar_lea.vmem %s280, 17
        %v302 = vld [vmem:[%s301] ss:$2 sm:$0xff]
        %s303 = scalar_lea.vmem %s280, 41
        %v304 = vld [vmem:[%s303] ss:$2 sm:$0xff]
        %s305 = scalar_lea.vmem %s280, 57
        %v306 = vld [vmem:[%s305] ss:$2 sm:$0xff]
        %s307 = scalar_lea.vmem %s280, 81
        %v308 = vld [vmem:[%s307] ss:$2 sm:$0xff]
        %s309 = scalar_lea.vmem %s280, 97
        %v310 = vld [vmem:[%s309] ss:$2 sm:$0xff]
        %s311 = scalar_lea.vmem %s280, 121
        %v312 = vld [vmem:[%s311] ss:$2 sm:$0xff]
        %s313 = scalar_lea.vmem %s280, 137
        %v314 = vld [vmem:[%s313] ss:$2 sm:$0xff]
        %s315 = scalar_lea.vmem %s280, 2
        %v316 = vld [vmem:[%s315] ss:$2 sm:$0xff]
        %s317 = scalar_lea.vmem %s280, 18
        %v318 = vld [vmem:[%s317] ss:$2 sm:$0xff]
        %s319 = scalar_lea.vmem %s280, 42
        %v320 = vld [vmem:[%s319] ss:$2 sm:$0xff]
        %s321 = scalar_lea.vmem %s280, 58
        %v322 = vld [vmem:[%s321] ss:$2 sm:$0xff]
        %s323 = scalar_lea.vmem %s280, 82
        %v324 = vld [vmem:[%s323] ss:$2 sm:$0xff]
        %s325 = scalar_lea.vmem %s280, 98
        %v326 = vld [vmem:[%s325] ss:$2 sm:$0xff]
        %s327 = scalar_lea.vmem %s280, 122
        %v328 = vld [vmem:[%s327] ss:$2 sm:$0xff]
        %s329 = scalar_lea.vmem %s280, 138
        %v330 = vld [vmem:[%s329] ss:$2 sm:$0xff]
        %s331 = scalar_lea.vmem %s280, 3
        %v332 = vld [vmem:[%s331] ss:$2 sm:$0xff]
        %s333 = scalar_lea.vmem %s280, 19
        %v334 = vld [vmem:[%s333] ss:$2 sm:$0xff]
        %s335 = scalar_lea.vmem %s280, 43
        %v336 = vld [vmem:[%s335] ss:$2 sm:$0xff]
        %s337 = scalar_lea.vmem %s280, 59
        %v338 = vld [vmem:[%s337] ss:$2 sm:$0xff]
        %s339 = scalar_lea.vmem %s280, 83
        %v340 = vld [vmem:[%s339] ss:$2 sm:$0xff]
        %s341 = scalar_lea.vmem %s280, 99
        %v342 = vld [vmem:[%s341] ss:$2 sm:$0xff]
        %s343 = scalar_lea.vmem %s280, 123
        %v344 = vld [vmem:[%s343] ss:$2 sm:$0xff]
        %s345 = scalar_lea.vmem %s280, 139
        %v346 = vld [vmem:[%s345] ss:$2 sm:$0xff]
        %v347 = vpack.c.bf16 %v286, %v284
        %v348 = vpack.c.bf16 %v302, %v300
        %v349 = vpack.c.bf16 %v318, %v316
        %v350 = vpack.c.bf16 %v334, %v332
        %v351 = vpack.c.bf16 %v290, %v288
        %v352 = vpack.c.bf16 %v306, %v304
        %v353 = vpack.c.bf16 %v322, %v320
        %v354 = vpack.c.bf16 %v338, %v336
        %v355 = vpack.c.bf16 %v294, %v292
        %v356 = vpack.c.bf16 %v310, %v308
        %v357 = vpack.c.bf16 %v326, %v324
        %v358 = vpack.c.bf16 %v342, %v340
        %v359 = vpack.c.bf16 %v298, %v296
        %v360 = vpack.c.bf16 %v314, %v312
        %v361 = vpack.c.bf16 %v330, %v328
        %v362 = vpack.c.bf16 %v346, %v344
        %v363 = vld [vmem:[%s1] sm:$0xf]
        %v364 = vld [vmem:[%s1 + $0x4] sm:$0xf]
        %v365 = vld [vmem:[%s1 + $0x8] sm:$0xf]
        %v366 = vld [vmem:[%s1 + $0xc] sm:$0xf]
        %v367 = vld [vmem:[%s1 + $0x10] sm:$0xf]
        %v368 = vld [vmem:[%s1 + $0x14] sm:$0xf]
        %v369 = vld [vmem:[%s1 + $0x18] sm:$0xf]
        %v370 = vld [vmem:[%s1 + $0x1c] sm:$0xf]
        %v371 = vld [vmem:[%s1 + $0x20] sm:$0xf]
        %v372 = vld [vmem:[%s1 + $0x24] sm:$0xf]
        %v373 = vld [vmem:[%s1 + $0x28] sm:$0xf]
        %v374 = vld [vmem:[%s1 + $0x2c] sm:$0xf]
        %v375 = vld [vmem:[%s1 + $0x30] sm:$0xf]
        %v376 = vld [vmem:[%s1 + $0x34] sm:$0xf]
        %v377 = vld [vmem:[%s1 + $0x38] sm:$0xf]
        %v378 = vld [vmem:[%s1 + $0x3c] sm:$0xf]
        %v379 = vld [vmem:[%s1 + $0x40] sm:$0xf]
        %v380 = vld [vmem:[%s1 + $0x44] sm:$0xf]
        %v381 = vld [vmem:[%s1 + $0x48] sm:$0xf]
        %v382 = vld [vmem:[%s1 + $0x4c] sm:$0xf]
        %v383 = vld [vmem:[%s1 + $0x50] sm:$0xf]
        %v384 = vld [vmem:[%s1 + $0x54] sm:$0xf]
        %v385 = vld [vmem:[%s1 + $0x58] sm:$0xf]
        %v386 = vld [vmem:[%s1 + $0x5c] sm:$0xf]
        %v387 = vld [vmem:[%s1 + $0x60] sm:$0xf]
        %v388 = vld [vmem:[%s1 + $0x64] sm:$0xf]
        %v389 = vld [vmem:[%s1 + $0x68] sm:$0xf]
        %v390 = vld [vmem:[%s1 + $0x6c] sm:$0xf]
        %v391 = vld [vmem:[%s1 + $0x70] sm:$0xf]
        %v392 = vld [vmem:[%s1 + $0x74] sm:$0xf]
        %v393 = vld [vmem:[%s1 + $0x78] sm:$0xf]
        %v394 = vld [vmem:[%s1 + $0x7c] sm:$0xf]
        %v395 = vld [vmem:[%s1 + $0x80] sm:$0xf]
        %v396 = vld [vmem:[%s1 + $0x84] sm:$0xf]
        %v397 = vld [vmem:[%s1 + $0x88] sm:$0xf]
        %v398 = vld [vmem:[%s1 + $0x8c] sm:$0xf]
        %v399 = vld [vmem:[%s1 + $0x90] sm:$0xf]
        %v400 = vld [vmem:[%s1 + $0x94] sm:$0xf]
        %v401 = vld [vmem:[%s1 + $0x98] sm:$0xf]
        %v402 = vld [vmem:[%s1 + $0x9c] sm:$0xf]
        %v403 = vld [vmem:[%s1 + $0xa0] sm:$0xf]
        %v404 = vld [vmem:[%s1 + $0xa4] sm:$0xf]
        %v405 = vld [vmem:[%s1 + $0xa8] sm:$0xf]
        %v406 = vld [vmem:[%s1 + $0xac] sm:$0xf]
        %v407 = vld [vmem:[%s1 + $0xb0] sm:$0xf]
        %v408 = vld [vmem:[%s1 + $0xb4] sm:$0xf]
        %v409 = vld [vmem:[%s1 + $0xb8] sm:$0xf]
        %v410 = vld [vmem:[%s1 + $0xbc] sm:$0xf]
        %v411 = vld [vmem:[%s1 + $0xc0] sm:$0xf]
        %v412 = vld [vmem:[%s1 + $0xc4] sm:$0xf]
        %v413 = vld [vmem:[%s1 + $0xc8] sm:$0xf]
        %v414 = vld [vmem:[%s1 + $0xcc] sm:$0xf]
        %v415 = vld [vmem:[%s1 + $0xd0] sm:$0xf]
        %v416 = vld [vmem:[%s1 + $0xd4] sm:$0xf]
        %v417 = vld [vmem:[%s1 + $0xd8] sm:$0xf]
        %v418 = vld [vmem:[%s1 + $0xdc] sm:$0xf]
        %v419 = vld [vmem:[%s1 + $0xe0] sm:$0xf]
        %v420 = vld [vmem:[%s1 + $0xe4] sm:$0xf]
        %v421 = vld [vmem:[%s1 + $0xe8] sm:$0xf]
        %v422 = vld [vmem:[%s1 + $0xec] sm:$0xf]
        %v423 = vld [vmem:[%s1 + $0xf0] sm:$0xf]
        %v424 = vld [vmem:[%s1 + $0xf4] sm:$0xf]
        %v425 = vld [vmem:[%s1 + $0xf8] sm:$0xf]
        %v426 = vld [vmem:[%s1 + $0xfc] sm:$0xf]
        %v427 = vld [vmem:[%s2] sm:$0x1]
        %v429 = vlaneseq
        %v430 = vshrl.u32 %v429, 7
        %v431 = vsub.s32 0, %v430
        %v432 = vrot.slane %v427, %v431
        %v498 = vunpack.c.l.b16 %v363
        %v499 = vunpack.c.l.b16 %v364
        %v500 = vunpack.c.l.b16 %v365
        %v501 = vunpack.c.l.b16 %v366
        %v502 = vunpack.c.l.b16 %v367
        %v503 = vunpack.c.l.b16 %v368
        %v504 = vunpack.c.l.b16 %v369
        %v505 = vunpack.c.l.b16 %v370
        %v506 = vunpack.c.l.b16 %v371
        %v507 = vunpack.c.l.b16 %v372
        %v508 = vunpack.c.l.b16 %v373
        %v509 = vunpack.c.l.b16 %v374
        %v510 = vunpack.c.l.b16 %v375
        %v511 = vunpack.c.l.b16 %v376
        %v512 = vunpack.c.l.b16 %v377
        %v513 = vunpack.c.l.b16 %v378
        %v514 = vunpack.c.l.b16 %v379
        %v515 = vunpack.c.l.b16 %v380
        %v516 = vunpack.c.l.b16 %v381
        %v517 = vunpack.c.l.b16 %v382
        %v518 = vunpack.c.l.b16 %v383
        %v519 = vunpack.c.l.b16 %v384
        %v520 = vunpack.c.l.b16 %v385
        %v521 = vunpack.c.l.b16 %v386
        %v522 = vunpack.c.l.b16 %v387
        %v523 = vunpack.c.l.b16 %v388
        %v524 = vunpack.c.l.b16 %v389
        %v525 = vunpack.c.l.b16 %v390
        %v526 = vunpack.c.l.b16 %v391
        %v527 = vunpack.c.l.b16 %v392
        %v528 = vunpack.c.l.b16 %v393
        %v529 = vunpack.c.l.b16 %v394
        %v530 = vunpack.c.l.b16 %v395
        %v531 = vunpack.c.l.b16 %v396
        %v532 = vunpack.c.l.b16 %v397
        %v533 = vunpack.c.l.b16 %v398
        %v534 = vunpack.c.l.b16 %v399
        %v535 = vunpack.c.l.b16 %v400
        %v536 = vunpack.c.l.b16 %v401
        %v537 = vunpack.c.l.b16 %v402
        %v538 = vunpack.c.l.b16 %v403
        %v539 = vunpack.c.l.b16 %v404
        %v540 = vunpack.c.l.b16 %v405
        %v541 = vunpack.c.l.b16 %v406
        %v542 = vunpack.c.l.b16 %v407
        %v543 = vunpack.c.l.b16 %v408
        %v544 = vunpack.c.l.b16 %v409
        %v545 = vunpack.c.l.b16 %v410
        %v546 = vunpack.c.l.b16 %v411
        %v547 = vunpack.c.l.b16 %v412
        %v548 = vunpack.c.l.b16 %v413
        %v549 = vunpack.c.l.b16 %v414
        %v550 = vunpack.c.l.b16 %v415
        %v551 = vunpack.c.l.b16 %v416
        %v552 = vunpack.c.l.b16 %v417
        %v553 = vunpack.c.l.b16 %v418
        %v554 = vunpack.c.l.b16 %v419
        %v555 = vunpack.c.l.b16 %v420
        %v556 = vunpack.c.l.b16 %v421
        %v557 = vunpack.c.l.b16 %v422
        %v558 = vunpack.c.l.b16 %v423
        %v559 = vunpack.c.l.b16 %v424
        %v560 = vunpack.c.l.b16 %v425
        %v561 = vunpack.c.l.b16 %v426
        %v562 = vpack.c.b16 %v499, %v498
        %v563 = vpack.c.b16 %v501, %v500
        %v564 = vpack.c.b16 %v503, %v502
        %v565 = vpack.c.b16 %v505, %v504
        %v566 = vpack.c.b16 %v507, %v506
        %v567 = vpack.c.b16 %v509, %v508
        %v568 = vpack.c.b16 %v511, %v510
        %v569 = vpack.c.b16 %v513, %v512
        %v570 = vpack.c.b16 %v515, %v514
        %v571 = vpack.c.b16 %v517, %v516
        %v572 = vpack.c.b16 %v519, %v518
        %v573 = vpack.c.b16 %v521, %v520
        %v574 = vpack.c.b16 %v523, %v522
        %v575 = vpack.c.b16 %v525, %v524
        %v576 = vpack.c.b16 %v527, %v526
        %v577 = vpack.c.b16 %v529, %v528
        %v578 = vpack.c.b16 %v531, %v530
        %v579 = vpack.c.b16 %v533, %v532
        %v580 = vpack.c.b16 %v535, %v534
        %v581 = vpack.c.b16 %v537, %v536
        %v582 = vpack.c.b16 %v539, %v538
        %v583 = vpack.c.b16 %v541, %v540
        %v584 = vpack.c.b16 %v543, %v542
        %v585 = vpack.c.b16 %v545, %v544
        %v586 = vpack.c.b16 %v547, %v546
        %v587 = vpack.c.b16 %v549, %v548
        %v588 = vpack.c.b16 %v551, %v550
        %v589 = vpack.c.b16 %v553, %v552
        %v590 = vpack.c.b16 %v555, %v554
        %v591 = vpack.c.b16 %v557, %v556
        %v592 = vpack.c.b16 %v559, %v558
        %v593 = vpack.c.b16 %v561, %v560
        %626 = vmatprep.subr.bf16.mxu0 0
        %627 = vmatpush1.bf16.msra.mxu0 %v562
        %628 = vmatprep.subr.bf16.mxu0 0
        %629 = vmatpush1.bf16.msra.mxu0 %v563
        %630 = vmatprep.subr.bf16.mxu0 0
        %631 = vmatpush1.bf16.msra.mxu0 %v564
        %632 = vmatprep.subr.bf16.mxu0 0
        %633 = vmatpush1.bf16.msra.mxu0 %v565
        %634 = vmatprep.subr.bf16.mxu0 0
        %635 = vmatpush1.bf16.msra.mxu0 %v566
        %636 = vmatprep.subr.bf16.mxu0 0
        %637 = vmatpush1.bf16.msra.mxu0 %v567
        %638 = vmatprep.subr.bf16.mxu0 0
        %639 = vmatpush1.bf16.msra.mxu0 %v568
        %640 = vmatprep.subr.bf16.mxu0 0
        %641 = vmatpush1.bf16.msra.mxu0 %v569
        %642 = vmatprep.subr.bf16.mxu0 0
        %643 = vmatpush1.bf16.msra.mxu0 %v570
        %644 = vmatprep.subr.bf16.mxu0 0
        %645 = vmatpush1.bf16.msra.mxu0 %v571
        %646 = vmatprep.subr.bf16.mxu0 0
        %647 = vmatpush1.bf16.msra.mxu0 %v572
        %648 = vmatprep.subr.bf16.mxu0 0
        %649 = vmatpush1.bf16.msra.mxu0 %v573
        %650 = vmatprep.subr.bf16.mxu0 0
        %651 = vmatpush1.bf16.msra.mxu0 %v574
        %652 = vmatprep.subr.bf16.mxu0 0
        %653 = vmatpush1.bf16.msra.mxu0 %v575
        %654 = vmatprep.subr.bf16.mxu0 0
        %655 = vmatpush1.bf16.msra.mxu0 %v576
        %656 = vmatprep.subr.bf16.mxu0 0
        %657 = vmatpush1.bf16.msra.mxu0 %v577
        %658 = vmatprep.mubr.bf16.mxu0 %v348
        %659 = vmatmul.mubr.bf16.gmra.mrb[0].mxu0 %v347
        %v660 = vpop.f32.mrb[0].mxu0
        %v661 = vadd.f32 %v432, %v660
        %v662 = vpop.f32.mrb[0].mxu0
        %v663 = vpop.f32.mrb[0].mxu0
        %v664 = vadd.f32 %v432, %v663
        %v665 = vpop.f32.mrb[0].mxu0
        %666 = vmatprep.mubr.bf16.mxu0 %v352
        %667 = vmatmul.mubr.bf16.gmra.mrb[0].mxu0 %v351
        %v668 = vpop.f32.mrb[0].mxu0
        %v669 = vadd.f32 %v432, %v668
        %v670 = vpop.f32.mrb[0].mxu0
        %v671 = vpop.f32.mrb[0].mxu0
        %v672 = vadd.f32 %v432, %v671
        %v673 = vpop.f32.mrb[0].mxu0
        %674 = vmatprep.mubr.bf16.mxu0 %v356
        %675 = vmatmul.mubr.bf16.gmra.mrb[0].mxu0 %v355
        %v676 = vpop.f32.mrb[0].mxu0
        %v677 = vadd.f32 %v432, %v676
        %v678 = vpop.f32.mrb[0].mxu0
        %v679 = vpop.f32.mrb[0].mxu0
        %v680 = vadd.f32 %v432, %v679
        %v681 = vpop.f32.mrb[0].mxu0
        %682 = vmatprep.mubr.bf16.mxu0 %v360
        %683 = vmatmul.mubr.bf16.gmra.mrb[0].mxu0 %v359
        %v684 = vpop.f32.mrb[0].mxu0
        %v685 = vadd.f32 %v432, %v684
        %v686 = vpop.f32.mrb[0].mxu0
        %v687 = vpop.f32.mrb[0].mxu0
        %v688 = vadd.f32 %v432, %v687
        %v689 = vpop.f32.mrb[0].mxu0
        %690 = vdwg.mxu0
        %691 = vmatprep.subr.bf16.mxu0 0
        %692 = vmatpush1.bf16.msra.mxu0 %v578
        %693 = vmatprep.subr.bf16.mxu0 0
        %694 = vmatpush1.bf16.msra.mxu0 %v579
        %695 = vmatprep.subr.bf16.mxu0 0
        %696 = vmatpush1.bf16.msra.mxu0 %v580
        %697 = vmatprep.subr.bf16.mxu0 0
        %698 = vmatpush1.bf16.msra.mxu0 %v581
        %699 = vmatprep.subr.bf16.mxu0 0
        %700 = vmatpush1.bf16.msra.mxu0 %v582
        %701 = vmatprep.subr.bf16.mxu0 0
        %702 = vmatpush1.bf16.msra.mxu0 %v583
        %703 = vmatprep.subr.bf16.mxu0 0
        %704 = vmatpush1.bf16.msra.mxu0 %v584
        %705 = vmatprep.subr.bf16.mxu0 0
        %706 = vmatpush1.bf16.msra.mxu0 %v585
        %707 = vmatprep.subr.bf16.mxu0 0
        %708 = vmatpush1.bf16.msra.mxu0 %v586
        %709 = vmatprep.subr.bf16.mxu0 0
        %710 = vmatpush1.bf16.msra.mxu0 %v587
        %711 = vmatprep.subr.bf16.mxu0 0
        %712 = vmatpush1.bf16.msra.mxu0 %v588
        %713 = vmatprep.subr.bf16.mxu0 0
        %714 = vmatpush1.bf16.msra.mxu0 %v589
        %715 = vmatprep.subr.bf16.mxu0 0
        %716 = vmatpush1.bf16.msra.mxu0 %v590
        %717 = vmatprep.subr.bf16.mxu0 0
        %718 = vmatpush1.bf16.msra.mxu0 %v591
        %719 = vmatprep.subr.bf16.mxu0 0
        %720 = vmatpush1.bf16.msra.mxu0 %v592
        %721 = vmatprep.subr.bf16.mxu0 0
        %722 = vmatpush1.bf16.msra.mxu0 %v593
        %723 = vmatprep.mubr.bf16.mxu0 %v350
        %724 = vmatmul.mubr.bf16.gmra.mrb[0].mxu0 %v349
        %v725 = vpop.f32.mrb[0].mxu0
        %v726 = vadd.f32 %v661, %v725
        %v727 = vpop.f32.mrb[0].mxu0
        %v728 = vpop.f32.mrb[0].mxu0
        %v729 = vadd.f32 %v664, %v728
        %v730 = vpop.f32.mrb[0].mxu0
        %731 = vmatprep.mubr.bf16.mxu0 %v354
        %732 = vmatmul.mubr.bf16.gmra.mrb[0].mxu0 %v353
        %v733 = vpop.f32.mrb[0].mxu0
        %v734 = vadd.f32 %v669, %v733
        %v735 = vpop.f32.mrb[0].mxu0
        %v736 = vpop.f32.mrb[0].mxu0
        %v737 = vadd.f32 %v672, %v736
        %v738 = vpop.f32.mrb[0].mxu0
        %739 = vmatprep.mubr.bf16.mxu0 %v358
        %740 = vmatmul.mubr.bf16.gmra.mrb[0].mxu0 %v357
        %v741 = vpop.f32.mrb[0].mxu0
        %v742 = vadd.f32 %v677, %v741
        %v743 = vpop.f32.mrb[0].mxu0
        %v744 = vpop.f32.mrb[0].mxu0
        %v745 = vadd.f32 %v680, %v744
        %v746 = vpop.f32.mrb[0].mxu0
        %747 = vmatprep.mubr.bf16.mxu0 %v362
        %748 = vmatmul.mubr.bf16.gmra.mrb[0].mxu0 %v361
        %v749 = vpop.f32.mrb[0].mxu0
        %v750 = vadd.f32 %v685, %v749
        %v751 = vpop.f32.mrb[0].mxu0
        %v752 = vpop.f32.mrb[0].mxu0
        %v753 = vadd.f32 %v688, %v752
        %v754 = vpop.f32.mrb[0].mxu0
        %755 = vdwg.mxu0
        %vm756 = vcmp.ge.f32.partialorder %v726, 0.0
        %vm757 = vcmp.ge.f32.partialorder %v729, 0.0
        %vm758 = vcmp.ge.f32.partialorder %v734, 0.0
        %vm759 = vcmp.ge.f32.partialorder %v737, 0.0
        %vm760 = vcmp.ge.f32.partialorder %v742, 0.0
        %vm761 = vcmp.ge.f32.partialorder %v745, 0.0
        %vm762 = vcmp.ge.f32.partialorder %v750, 0.0
        %vm763 = vcmp.ge.f32.partialorder %v753, 0.0
        %v764 = vmul.f32 %v726, 0.2
        %v765 = vmul.f32 %v729, 0.2
        %v766 = vmul.f32 %v734, 0.2
        %v767 = vmul.f32 %v737, 0.2
        %v768 = vmul.f32 %v742, 0.2
        %v769 = vmul.f32 %v745, 0.2
        %v770 = vmul.f32 %v750, 0.2
        %v771 = vmul.f32 %v753, 0.2
        %v772 = vsel %vm756, %v726, %v764
        %v773 = vsel %vm757, %v729, %v765
        %v774 = vsel %vm758, %v734, %v766
        %v775 = vsel %vm759, %v737, %v767
        %v776 = vsel %vm760, %v742, %v768
        %v777 = vsel %vm761, %v745, %v769
        %v778 = vsel %vm762, %v750, %v770
        %v779 = vsel %vm763, %v753, %v771
        %780 = vst [vmem:[#allocation2 + $0x7] sm:$0x1] 0.0
        %781 = vst [vmem:[#allocation2 + $0x27] sm:$0x1] 0.0
        %782 = vst [vmem:[#allocation2 + $0x47] sm:$0x1] 0.0
        %783 = vst [vmem:[#allocation2 + $0x67] sm:$0x1] 0.0
        %784 = vst [vmem:[#allocation2 + $0x18] sm:$0x1] 0.0
        %785 = vst [vmem:[#allocation2 + $0x38] sm:$0x1] 0.0
        %786 = vst [vmem:[#allocation2 + $0x58] sm:$0x1] 0.0
        %787 = vst [vmem:[#allocation2 + $0x78] sm:$0x1] 0.0
        %788 = vst [vmem:[#allocation2 + $0x8] sm:$0xff] %v772
        %789 = vst [vmem:[#allocation2 + $0x10] sm:$0xff] %v773
        %790 = vst [vmem:[#allocation2 + $0x28] sm:$0xff] %v774
        %791 = vst [vmem:[#allocation2 + $0x30] sm:$0xff] %v775
        %792 = vst [vmem:[#allocation2 + $0x48] sm:$0xff] %v776
        %793 = vst [vmem:[#allocation2 + $0x50] sm:$0xff] %v777
        %794 = vst [vmem:[#allocation2 + $0x68] sm:$0xff] %v778
        %795 = vst [vmem:[#allocation2 + $0x70] sm:$0xff] %v779
        %s796 = scalar_lea.vmem [#allocation2], 7
        %v797 = vld [vmem:[%s796] ss:$2 sm:$0xff]
        %s798 = scalar_lea.vmem [#allocation2], 39
        %v799 = vld [vmem:[%s798] ss:$2 sm:$0xff]
        %s800 = scalar_lea.vmem [#allocation2], 71
        %v801 = vld [vmem:[%s800] ss:$2 sm:$0xff]
        %s802 = scalar_lea.vmem [#allocation2], 103
        %v803 = vld [vmem:[%s802] ss:$2 sm:$0xff]
        %s804 = scalar_lea.vmem [#allocation2], 8
        %v805 = vld [vmem:[%s804] ss:$2 sm:$0xff]
        %s806 = scalar_lea.vmem [#allocation2], 40
        %v807 = vld [vmem:[%s806] ss:$2 sm:$0xff]
        %s808 = scalar_lea.vmem [#allocation2], 72
        %v809 = vld [vmem:[%s808] ss:$2 sm:$0xff]
        %s810 = scalar_lea.vmem [#allocation2], 104
        %v811 = vld [vmem:[%s810] ss:$2 sm:$0xff]
        %s812 = scalar_lea.vmem [#allocation2], 9
        %v813 = vld [vmem:[%s812] ss:$2 sm:$0xff]
        %s814 = scalar_lea.vmem [#allocation2], 41
        %v815 = vld [vmem:[%s814] ss:$2 sm:$0xff]
        %s816 = scalar_lea.vmem [#allocation2], 73
        %v817 = vld [vmem:[%s816] ss:$2 sm:$0xff]
        %s818 = scalar_lea.vmem [#allocation2], 105
        %v819 = vld [vmem:[%s818] ss:$2 sm:$0xff]
        %s820 = scalar_lea.vmem [#allocation2], 10
        %v821 = vld [vmem:[%s820] ss:$2 sm:$0xff]
        %s822 = scalar_lea.vmem [#allocation2], 42
        %v823 = vld [vmem:[%s822] ss:$2 sm:$0xff]
        %s824 = scalar_lea.vmem [#allocation2], 74
        %v825 = vld [vmem:[%s824] ss:$2 sm:$0xff]
        %s826 = scalar_lea.vmem [#allocation2], 106
        %v827 = vld [vmem:[%s826] ss:$2 sm:$0xff]
        %v828 = vpack.c.bf16 %v799, %v797
        %v829 = vpack.c.bf16 %v807, %v805
        %v830 = vpack.c.bf16 %v815, %v813
        %v831 = vpack.c.bf16 %v823, %v821
        %v832 = vpack.c.bf16 %v803, %v801
        %v833 = vpack.c.bf16 %v811, %v809
        %v834 = vpack.c.bf16 %v819, %v817
        %v835 = vpack.c.bf16 %v827, %v825
        %v836 = vld [vmem:[%s3] sm:$0xf]
        %v837 = vld [vmem:[%s3 + $0x4] sm:$0xf]
        %v838 = vld [vmem:[%s3 + $0x8] sm:$0xf]
        %v839 = vld [vmem:[%s3 + $0xc] sm:$0xf]
        %v840 = vld [vmem:[%s3 + $0x10] sm:$0xf]
        %v841 = vld [vmem:[%s3 + $0x14] sm:$0xf]
        %v842 = vld [vmem:[%s3 + $0x18] sm:$0xf]
        %v843 = vld [vmem:[%s3 + $0x1c] sm:$0xf]
        %v844 = vld [vmem:[%s3 + $0x20] sm:$0xf]
        %v845 = vld [vmem:[%s3 + $0x24] sm:$0xf]
        %v846 = vld [vmem:[%s3 + $0x28] sm:$0xf]
        %v847 = vld [vmem:[%s3 + $0x2c] sm:$0xf]
        %v848 = vld [vmem:[%s3 + $0x30] sm:$0xf]
        %v849 = vld [vmem:[%s3 + $0x34] sm:$0xf]
        %v850 = vld [vmem:[%s3 + $0x38] sm:$0xf]
        %v851 = vld [vmem:[%s3 + $0x3c] sm:$0xf]
        %v852 = vld [vmem:[%s3 + $0x40] sm:$0xf]
        %v853 = vld [vmem:[%s3 + $0x44] sm:$0xf]
        %v854 = vld [vmem:[%s3 + $0x48] sm:$0xf]
        %v855 = vld [vmem:[%s3 + $0x4c] sm:$0xf]
        %v856 = vld [vmem:[%s3 + $0x50] sm:$0xf]
        %v857 = vld [vmem:[%s3 + $0x54] sm:$0xf]
        %v858 = vld [vmem:[%s3 + $0x58] sm:$0xf]
        %v859 = vld [vmem:[%s3 + $0x5c] sm:$0xf]
        %v860 = vld [vmem:[%s3 + $0x60] sm:$0xf]
        %v861 = vld [vmem:[%s3 + $0x64] sm:$0xf]
        %v862 = vld [vmem:[%s3 + $0x68] sm:$0xf]
        %v863 = vld [vmem:[%s3 + $0x6c] sm:$0xf]
        %v864 = vld [vmem:[%s3 + $0x70] sm:$0xf]
        %v865 = vld [vmem:[%s3 + $0x74] sm:$0xf]
        %v866 = vld [vmem:[%s3 + $0x78] sm:$0xf]
        %v867 = vld [vmem:[%s3 + $0x7c] sm:$0xf]
        %v868 = vld [vmem:[%s3 + $0x80] sm:$0xf]
        %v869 = vld [vmem:[%s3 + $0x84] sm:$0xf]
        %v870 = vld [vmem:[%s3 + $0x88] sm:$0xf]
        %v871 = vld [vmem:[%s3 + $0x8c] sm:$0xf]
        %v872 = vld [vmem:[%s3 + $0x90] sm:$0xf]
        %v873 = vld [vmem:[%s3 + $0x94] sm:$0xf]
        %v874 = vld [vmem:[%s3 + $0x98] sm:$0xf]
        %v875 = vld [vmem:[%s3 + $0x9c] sm:$0xf]
        %v876 = vld [vmem:[%s3 + $0xa0] sm:$0xf]
        %v877 = vld [vmem:[%s3 + $0xa4] sm:$0xf]
        %v878 = vld [vmem:[%s3 + $0xa8] sm:$0xf]
        %v879 = vld [vmem:[%s3 + $0xac] sm:$0xf]
        %v880 = vld [vmem:[%s3 + $0xb0] sm:$0xf]
        %v881 = vld [vmem:[%s3 + $0xb4] sm:$0xf]
        %v882 = vld [vmem:[%s3 + $0xb8] sm:$0xf]
        %v883 = vld [vmem:[%s3 + $0xbc] sm:$0xf]
        %v884 = vld [vmem:[%s3 + $0xc0] sm:$0xf]
        %v885 = vld [vmem:[%s3 + $0xc4] sm:$0xf]
        %v886 = vld [vmem:[%s3 + $0xc8] sm:$0xf]
        %v887 = vld [vmem:[%s3 + $0xcc] sm:$0xf]
        %v888 = vld [vmem:[%s3 + $0xd0] sm:$0xf]
        %v889 = vld [vmem:[%s3 + $0xd4] sm:$0xf]
        %v890 = vld [vmem:[%s3 + $0xd8] sm:$0xf]
        %v891 = vld [vmem:[%s3 + $0xdc] sm:$0xf]
        %v892 = vld [vmem:[%s3 + $0xe0] sm:$0xf]
        %v893 = vld [vmem:[%s3 + $0xe4] sm:$0xf]
        %v894 = vld [vmem:[%s3 + $0xe8] sm:$0xf]
        %v895 = vld [vmem:[%s3 + $0xec] sm:$0xf]
        %v896 = vld [vmem:[%s3 + $0xf0] sm:$0xf]
        %v897 = vld [vmem:[%s3 + $0xf4] sm:$0xf]
        %v898 = vld [vmem:[%s3 + $0xf8] sm:$0xf]
        %v899 = vld [vmem:[%s3 + $0xfc] sm:$0xf]
        %v900 = vld [vmem:[%s4] sm:$0x1]
        %v902 = vlaneseq
        %v903 = vshrl.u32 %v902, 7
        %v904 = vsub.s32 0, %v903
        %v905 = vrot.slane %v900, %v904
        %v971 = vunpack.c.l.b16 %v836
        %v972 = vunpack.c.l.b16 %v837
        %v973 = vunpack.c.l.b16 %v838
        %v974 = vunpack.c.l.b16 %v839
        %v975 = vunpack.c.l.b16 %v840
        %v976 = vunpack.c.l.b16 %v841
        %v977 = vunpack.c.l.b16 %v842
        %v978 = vunpack.c.l.b16 %v843
        %v979 = vunpack.c.l.b16 %v844
        %v980 = vunpack.c.l.b16 %v845
        %v981 = vunpack.c.l.b16 %v846
        %v982 = vunpack.c.l.b16 %v847
        %v983 = vunpack.c.l.b16 %v848
        %v984 = vunpack.c.l.b16 %v849
        %v985 = vunpack.c.l.b16 %v850
        %v986 = vunpack.c.l.b16 %v851
        %v987 = vunpack.c.l.b16 %v852
        %v988 = vunpack.c.l.b16 %v853
        %v989 = vunpack.c.l.b16 %v854
        %v990 = vunpack.c.l.b16 %v855
        %v991 = vunpack.c.l.b16 %v856
        %v992 = vunpack.c.l.b16 %v857
        %v993 = vunpack.c.l.b16 %v858
        %v994 = vunpack.c.l.b16 %v859
        %v995 = vunpack.c.l.b16 %v860
        %v996 = vunpack.c.l.b16 %v861
        %v997 = vunpack.c.l.b16 %v862
        %v998 = vunpack.c.l.b16 %v863
        %v999 = vunpack.c.l.b16 %v864
        %v1000 = vunpack.c.l.b16 %v865
        %v1001 = vunpack.c.l.b16 %v866
        %v1002 = vunpack.c.l.b16 %v867
        %v1003 = vunpack.c.l.b16 %v868
        %v1004 = vunpack.c.l.b16 %v869
        %v1005 = vunpack.c.l.b16 %v870
        %v1006 = vunpack.c.l.b16 %v871
        %v1007 = vunpack.c.l.b16 %v872
        %v1008 = vunpack.c.l.b16 %v873
        %v1009 = vunpack.c.l.b16 %v874
        %v1010 = vunpack.c.l.b16 %v875
        %v1011 = vunpack.c.l.b16 %v876
        %v1012 = vunpack.c.l.b16 %v877
        %v1013 = vunpack.c.l.b16 %v878
        %v1014 = vunpack.c.l.b16 %v879
        %v1015 = vunpack.c.l.b16 %v880
        %v1016 = vunpack.c.l.b16 %v881
        %v1017 = vunpack.c.l.b16 %v882
        %v1018 = vunpack.c.l.b16 %v883
        %v1019 = vunpack.c.l.b16 %v884
        %v1020 = vunpack.c.l.b16 %v885
        %v1021 = vunpack.c.l.b16 %v886
        %v1022 = vunpack.c.l.b16 %v887
        %v1023 = vunpack.c.l.b16 %v888
        %v1024 = vunpack.c.l.b16 %v889
        %v1025 = vunpack.c.l.b16 %v890
        %v1026 = vunpack.c.l.b16 %v891
        %v1027 = vunpack.c.l.b16 %v892
        %v1028 = vunpack.c.l.b16 %v893
        %v1029 = vunpack.c.l.b16 %v894
        %v1030 = vunpack.c.l.b16 %v895
        %v1031 = vunpack.c.l.b16 %v896
        %v1032 = vunpack.c.l.b16 %v897
        %v1033 = vunpack.c.l.b16 %v898
        %v1034 = vunpack.c.l.b16 %v899
        %v1035 = vpack.c.b16 %v972, %v971
        %v1036 = vpack.c.b16 %v974, %v973
        %v1037 = vpack.c.b16 %v976, %v975
        %v1038 = vpack.c.b16 %v978, %v977
        %v1039 = vpack.c.b16 %v980, %v979
        %v1040 = vpack.c.b16 %v982, %v981
        %v1041 = vpack.c.b16 %v984, %v983
        %v1042 = vpack.c.b16 %v986, %v985
        %v1043 = vpack.c.b16 %v988, %v987
        %v1044 = vpack.c.b16 %v990, %v989
        %v1045 = vpack.c.b16 %v992, %v991
        %v1046 = vpack.c.b16 %v994, %v993
        %v1047 = vpack.c.b16 %v996, %v995
        %v1048 = vpack.c.b16 %v998, %v997
        %v1049 = vpack.c.b16 %v1000, %v999
        %v1050 = vpack.c.b16 %v1002, %v1001
        %v1051 = vpack.c.b16 %v1004, %v1003
        %v1052 = vpack.c.b16 %v1006, %v1005
        %v1053 = vpack.c.b16 %v1008, %v1007
        %v1054 = vpack.c.b16 %v1010, %v1009
        %v1055 = vpack.c.b16 %v1012, %v1011
        %v1056 = vpack.c.b16 %v1014, %v1013
        %v1057 = vpack.c.b16 %v1016, %v1015
        %v1058 = vpack.c.b16 %v1018, %v1017
        %v1059 = vpack.c.b16 %v1020, %v1019
        %v1060 = vpack.c.b16 %v1022, %v1021
        %v1061 = vpack.c.b16 %v1024, %v1023
        %v1062 = vpack.c.b16 %v1026, %v1025
        %v1063 = vpack.c.b16 %v1028, %v1027
        %v1064 = vpack.c.b16 %v1030, %v1029
        %v1065 = vpack.c.b16 %v1032, %v1031
        %v1066 = vpack.c.b16 %v1034, %v1033
        %1099 = vmatprep.subr.bf16.mxu0 0
        %1100 = vmatpush1.bf16.msra.mxu0 %v1035
        %1101 = vmatprep.subr.bf16.mxu0 0
        %1102 = vmatpush1.bf16.msra.mxu0 %v1036
        %1103 = vmatprep.subr.bf16.mxu0 0
        %1104 = vmatpush1.bf16.msra.mxu0 %v1037
        %1105 = vmatprep.subr.bf16.mxu0 0
        %1106 = vmatpush1.bf16.msra.mxu0 %v1038
        %1107 = vmatprep.subr.bf16.mxu0 0
        %1108 = vmatpush1.bf16.msra.mxu0 %v1039
        %1109 = vmatprep.subr.bf16.mxu0 0
        %1110 = vmatpush1.bf16.msra.mxu0 %v1040
        %1111 = vmatprep.subr.bf16.mxu0 0
        %1112 = vmatpush1.bf16.msra.mxu0 %v1041
        %1113 = vmatprep.subr.bf16.mxu0 0
        %1114 = vmatpush1.bf16.msra.mxu0 %v1042
        %1115 = vmatprep.subr.bf16.mxu0 0
        %1116 = vmatpush1.bf16.msra.mxu0 %v1043
        %1117 = vmatprep.subr.bf16.mxu0 0
        %1118 = vmatpush1.bf16.msra.mxu0 %v1044
        %1119 = vmatprep.subr.bf16.mxu0 0
        %1120 = vmatpush1.bf16.msra.mxu0 %v1045
        %1121 = vmatprep.subr.bf16.mxu0 0
        %1122 = vmatpush1.bf16.msra.mxu0 %v1046
        %1123 = vmatprep.subr.bf16.mxu0 0
        %1124 = vmatpush1.bf16.msra.mxu0 %v1047
        %1125 = vmatprep.subr.bf16.mxu0 0
        %1126 = vmatpush1.bf16.msra.mxu0 %v1048
        %1127 = vmatprep.subr.bf16.mxu0 0
        %1128 = vmatpush1.bf16.msra.mxu0 %v1049
        %1129 = vmatprep.subr.bf16.mxu0 0
        %1130 = vmatpush1.bf16.msra.mxu0 %v1050
        %1131 = vmatprep.mubr.bf16.mxu0 %v829
        %1132 = vmatmul.mubr.bf16.gmra.mrb[0].mxu0 %v828
        %v1133 = vpop.f32.mrb[0].mxu0
        %v1134 = vadd.f32 %v905, %v1133
        %v1135 = vpop.f32.mrb[0].mxu0
        %v1136 = vpop.f32.mrb[0].mxu0
        %v1137 = vadd.f32 %v905, %v1136
        %v1138 = vpop.f32.mrb[0].mxu0
        %1139 = vmatprep.mubr.bf16.mxu0 %v833
        %1140 = vmatmul.mubr.bf16.gmra.mrb[0].mxu0 %v832
        %v1141 = vpop.f32.mrb[0].mxu0
        %v1142 = vadd.f32 %v905, %v1141
        %v1143 = vpop.f32.mrb[0].mxu0
        %v1144 = vpop.f32.mrb[0].mxu0
        %v1145 = vadd.f32 %v905, %v1144
        %v1146 = vpop.f32.mrb[0].mxu0
        %1147 = vdwg.mxu0
        %1148 = vmatprep.subr.bf16.mxu0 0
        %1149 = vmatpush1.bf16.msra.mxu0 %v1051
        %1150 = vmatprep.subr.bf16.mxu0 0
        %1151 = vmatpush1.bf16.msra.mxu0 %v1052
        %1152 = vmatprep.subr.bf16.mxu0 0
        %1153 = vmatpush1.bf16.msra.mxu0 %v1053
        %1154 = vmatprep.subr.bf16.mxu0 0
        %1155 = vmatpush1.bf16.msra.mxu0 %v1054
        %1156 = vmatprep.subr.bf16.mxu0 0
        %1157 = vmatpush1.bf16.msra.mxu0 %v1055
        %1158 = vmatprep.subr.bf16.mxu0 0
        %1159 = vmatpush1.bf16.msra.mxu0 %v1056
        %1160 = vmatprep.subr.bf16.mxu0 0
        %1161 = vmatpush1.bf16.msra.mxu0 %v1057
        %1162 = vmatprep.subr.bf16.mxu0 0
        %1163 = vmatpush1.bf16.msra.mxu0 %v1058
        %1164 = vmatprep.subr.bf16.mxu0 0
        %1165 = vmatpush1.bf16.msra.mxu0 %v1059
        %1166 = vmatprep.subr.bf16.mxu0 0
        %1167 = vmatpush1.bf16.msra.mxu0 %v1060
        %1168 = vmatprep.subr.bf16.mxu0 0
        %1169 = vmatpush1.bf16.msra.mxu0 %v1061
        %1170 = vmatprep.subr.bf16.mxu0 0
        %1171 = vmatpush1.bf16.msra.mxu0 %v1062
        %1172 = vmatprep.subr.bf16.mxu0 0
        %1173 = vmatpush1.bf16.msra.mxu0 %v1063
        %1174 = vmatprep.subr.bf16.mxu0 0
        %1175 = vmatpush1.bf16.msra.mxu0 %v1064
        %1176 = vmatprep.subr.bf16.mxu0 0
        %1177 = vmatpush1.bf16.msra.mxu0 %v1065
        %1178 = vmatprep.subr.bf16.mxu0 0
        %1179 = vmatpush1.bf16.msra.mxu0 %v1066
        %1180 = vmatprep.mubr.bf16.mxu0 %v831
        %1181 = vmatmul.mubr.bf16.gmra.mrb[0].mxu0 %v830
        %v1182 = vpop.f32.mrb[0].mxu0
        %v1183 = vadd.f32 %v1134, %v1182
        %v1184 = vpop.f32.mrb[0].mxu0
        %v1185 = vpop.f32.mrb[0].mxu0
        %v1186 = vadd.f32 %v1137, %v1185
        %v1187 = vpop.f32.mrb[0].mxu0
        %1188 = vmatprep.mubr.bf16.mxu0 %v835
        %1189 = vmatmul.mubr.bf16.gmra.mrb[0].mxu0 %v834
        %v1190 = vpop.f32.mrb[0].mxu0
        %v1191 = vadd.f32 %v1142, %v1190
        %v1192 = vpop.f32.mrb[0].mxu0
        %v1193 = vpop.f32.mrb[0].mxu0
        %v1194 = vadd.f32 %v1145, %v1193
        %v1195 = vpop.f32.mrb[0].mxu0
        %1196 = vdwg.mxu0
        %vm1197 = vcmp.ge.f32.partialorder %v1183, 0.0
        %vm1198 = vcmp.ge.f32.partialorder %v1186, 0.0
        %vm1199 = vcmp.ge.f32.partialorder %v1191, 0.0
        %vm1200 = vcmp.ge.f32.partialorder %v1194, 0.0
        %v1201 = vmul.f32 %v1183, 0.2
        %v1202 = vmul.f32 %v1186, 0.2
        %v1203 = vmul.f32 %v1191, 0.2
        %v1204 = vmul.f32 %v1194, 0.2
        %v1205 = vsel %vm1197, %v1183, %v1201
        %v1206 = vsel %vm1198, %v1186, %v1202
        %v1207 = vsel %vm1199, %v1191, %v1203
        %v1208 = vsel %vm1200, %v1194, %v1204
        %v1209 = vpack.c.bf16 %v1206, %v1205
        %v1210 = vpack.c.bf16 %v1208, %v1207
        %v1211 = vld [vmem:[%s5] sm:$0xf]
        %v1212 = vld [vmem:[%s5 + $0x4] sm:$0xf]
        %v1213 = vld [vmem:[%s5 + $0x8] sm:$0xf]
        %v1214 = vld [vmem:[%s5 + $0xc] sm:$0xf]
        %v1215 = vld [vmem:[%s5 + $0x10] sm:$0xf]
        %v1216 = vld [vmem:[%s5 + $0x14] sm:$0xf]
        %v1217 = vld [vmem:[%s5 + $0x18] sm:$0xf]
        %v1218 = vld [vmem:[%s5 + $0x1c] sm:$0xf]
        %v1219 = vld [vmem:[%s5 + $0x20] sm:$0xf]
        %v1220 = vld [vmem:[%s5 + $0x24] sm:$0xf]
        %v1221 = vld [vmem:[%s5 + $0x28] sm:$0xf]
        %v1222 = vld [vmem:[%s5 + $0x2c] sm:$0xf]
        %v1223 = vld [vmem:[%s5 + $0x30] sm:$0xf]
        %v1224 = vld [vmem:[%s5 + $0x34] sm:$0xf]
        %v1225 = vld [vmem:[%s5 + $0x38] sm:$0xf]
        %v1226 = vld [vmem:[%s5 + $0x3c] sm:$0xf]
        %v1227 = vld [vmem:[%s6] sm:$0x1]
        %v1229 = vlaneseq
        %v1230 = vshrl.u32 %v1229, 7
        %v1231 = vsub.s32 0, %v1230
        %v1232 = vrot.slane %v1227, %v1231
        %v1250 = vunpack.c.l.b16 %v1211
        %v1251 = vunpack.c.l.b16 %v1212
        %v1252 = vunpack.c.l.b16 %v1213
        %v1253 = vunpack.c.l.b16 %v1214
        %v1254 = vunpack.c.l.b16 %v1215
        %v1255 = vunpack.c.l.b16 %v1216
        %v1256 = vunpack.c.l.b16 %v1217
        %v1257 = vunpack.c.l.b16 %v1218
        %v1258 = vunpack.c.l.b16 %v1219
        %v1259 = vunpack.c.l.b16 %v1220
        %v1260 = vunpack.c.l.b16 %v1221
        %v1261 = vunpack.c.l.b16 %v1222
        %v1262 = vunpack.c.l.b16 %v1223
        %v1263 = vunpack.c.l.b16 %v1224
        %v1264 = vunpack.c.l.b16 %v1225
        %v1265 = vunpack.c.l.b16 %v1226
        %v1266 = vpack.c.b16 %v1251, %v1250
        %v1267 = vpack.c.b16 %v1253, %v1252
        %v1268 = vpack.c.b16 %v1255, %v1254
        %v1269 = vpack.c.b16 %v1257, %v1256
        %v1270 = vpack.c.b16 %v1259, %v1258
        %v1271 = vpack.c.b16 %v1261, %v1260
        %v1272 = vpack.c.b16 %v1263, %v1262
        %v1273 = vpack.c.b16 %v1265, %v1264
        %1282 = vmatprep.subr.bf16.mxu0 0
        %1283 = vmatpush1.bf16.msra.mxu0 %v1266
        %1284 = vmatprep.subr.bf16.mxu0 0
        %1285 = vmatpush1.bf16.msra.mxu0 %v1267
        %1286 = vmatprep.subr.bf16.mxu0 0
        %1287 = vmatpush1.bf16.msra.mxu0 %v1268
        %1288 = vmatprep.subr.bf16.mxu0 0
        %1289 = vmatpush1.bf16.msra.mxu0 %v1269
        %1290 = vmatprep.subr.bf16.mxu0 0
        %1291 = vmatpush1.bf16.msra.mxu0 %v1270
        %1292 = vmatprep.subr.bf16.mxu0 0
        %1293 = vmatpush1.bf16.msra.mxu0 %v1271
        %1294 = vmatprep.subr.bf16.mxu0 0
        %1295 = vmatpush1.bf16.msra.mxu0 %v1272
        %1296 = vmatprep.subr.bf16.mxu0 0
        %1297 = vmatpush1.bf16.msra.mxu0 %v1273
        %1298 = vmatprep.subr.bf16.mxu0 0
        %1299 = vmatpush1.bf16.msra.mxu0 0
        %1300 = vmatprep.subr.bf16.mxu0 0
        %1301 = vmatpush1.bf16.msra.mxu0 0
        %1302 = vmatprep.subr.bf16.mxu0 0
        %1303 = vmatpush1.bf16.msra.mxu0 0
        %1304 = vmatprep.subr.bf16.mxu0 0
        %1305 = vmatpush1.bf16.msra.mxu0 0
        %1306 = vmatprep.subr.bf16.mxu0 0
        %1307 = vmatpush1.bf16.msra.mxu0 0
        %1308 = vmatprep.subr.bf16.mxu0 0
        %1309 = vmatpush1.bf16.msra.mxu0 0
        %1310 = vmatprep.subr.bf16.mxu0 0
        %1311 = vmatpush1.bf16.msra.mxu0 0
        %1312 = vmatprep.subr.bf16.mxu0 0
        %1313 = vmatpush1.bf16.msra.mxu0 0
        %1314 = vmatprep.mubr.bf16.mxu0 0
        %1315 = vmatmul.mubr.bf16.gmra.mrb[0].mxu0 %v1209
        %v1316 = vpop.f32.mrb[0].mxu0
        %v1317 = vadd.f32 %v1232, %v1316
        %v1318 = vpop.f32.mrb[0].mxu0
        %v1319 = vpop.f32.mrb[0].mxu0
        %v1320 = vadd.f32 %v1232, %v1319
        %v1321 = vpop.f32.mrb[0].mxu0
        %1322 = vmatprep.mubr.bf16.mxu0 0
        %1323 = vmatmul.mubr.bf16.gmra.mrb[0].mxu0 %v1210
        %v1324 = vpop.f32.mrb[0].mxu0
        %v1325 = vadd.f32 %v1232, %v1324
        %v1326 = vpop.f32.mrb[0].mxu0
        %v1327 = vpop.f32.mrb[0].mxu0
        %v1328 = vadd.f32 %v1232, %v1327
        %v1329 = vpop.f32.mrb[0].mxu0
        %1330 = vdwg.mxu0
        %1331 = vst [vmem:[%s274] sm:$0xff] %v1317
        %1332 = vst [vmem:[%s274 + $0x8] sm:$0xff] %v1320
        %1333 = vst [vmem:[%s274 + $0x10] sm:$0xff] %v1325
        %1334 = vst [vmem:[%s274 + $0x18] sm:$0xff] %v1328
        %s1335 = sand.u32 %s181, 1
        %s1336 = scalar_lea.sflag [#allocation4], %s1335
        %s1337 = sand.u32 %s181, 1
        %s1338 = smul.addr %s1337, 32
        %s1339 = scalar_lea.vmem [#allocation3], %s1338
        // Predicated region
        $region49: #{tpu_custom_call.1} parent=47 // pred_check
          %p1340 = pneg %p191
        $region50: #{tpu_custom_call.1} parent=47 // pred_check_branch
          %1342 = sbr.rel (%p1340) target = $region52
        $region51: #{tpu_custom_call.1} parent=47 // pred_region
          %s1343 = smul.u32 4, %s21
          %s1345 = ssub.s32 512, 512
          %1346 = vsyncadd %s1336, %s1345
          %s1347 = smul.addr %s1343, 128
          %s1348 = scalar_lea.hbm %s7, %s1347
          %s1349 = sshll.u32 %s1339, 4
          %s1350 = int_to_ptr.vmem [resolvable:$true] %s1349
          %1355 = dma.vmem_to_hbm [thread:$0]  %s1350, 512, %s1348, %s1336, 128, 128, 8
        $region52: #{tpu_custom_call.1} parent=47 // pred_fallthru
          _
      $region48: #{tpu_custom_call.1} parent=5 // pred_fallthru
        _
      %p1356 = scmp.le.s32.totalorder 2, %s16
      // Predicated region
      $region53: #{tpu_custom_call.1} parent=5 // pred_check
        %p1357 = pneg %p1356
      $region54: #{tpu_custom_call.1} parent=5 // pred_check_branch
        %1359 = sbr.rel (%p1357) target = $region56
      $region55: #{tpu_custom_call.1} parent=5 // pred_region
        %s1360 = ssub.s32 %s16, 2
        // Predicated region
        $region57: #{tpu_custom_call.1} parent=55 // pred_check
          %p1361 = pneg %p197
        $region58: #{tpu_custom_call.1} parent=55 // pred_check_branch
          %1363 = sbr.rel (%p1361) target = $region60
        $region59: #{tpu_custom_call.1} parent=55 // pred_region
          %s1364 = sand.u32 %s182, 1
          %s1365 = scalar_lea.sflag [#allocation4], %s1364
          %s1366 = sand.u32 %s182, 1
          %s1367 = smul.addr %s1366, 32
          %s1368 = scalar_lea.vmem [#allocation3], %s1367
          %1369 = dma.done %s1365, 512
        $region60: #{tpu_custom_call.1} parent=55 // pred_fallthru
          _
      $region56: #{tpu_custom_call.1} parent=5 // pred_fallthru
        _
    $region6: #{tpu_custom_call.1} parent=1 // loop_footer
      %s20 = sadd.s32 1, %s16
    $region7: #{tpu_custom_call.1} parent=1 // loop_footer_branch
      %15 = sbr.rel target = $region3
    $region8: #{tpu_custom_call.1} parent=1 // loop_exit
      _
    %1370 = vsyncpa [#allocation4], 1
    %s1371 = scalar_lea.sflag [#allocation4], 1
    %1372 = vsyncpa %s1371, 1

// kernel: tpu_custom_call.1
$region0: #{tpu_custom_call.1}
  #allocation0 [shape = 'u32[]', space=smem, size = 0x4, offset = 0x4, fixed_abs, tag = 'smem constant byte address 0x4 - core index']
  #allocation1 [shape = 'u32[144,128]{1,0:T(1,128)}', space=vmem, size = 0x12000, scoped, tag = 'internal scratch']
  #allocation2 [shape = 'f32[4,32,128]{2,1,0:T(8,128)}', space=vmem, size = 0x10000, scoped, tag = 'scratch operand']
  %s0 = inlined_call_operand.vmem [shape: f32[8,34,128], index: 0, kind: input, shape index: {}]
  %s1 = inlined_call_operand.vmem [shape: bf16[512,128], index: 1, kind: input, shape index: {}]
  %s2 = inlined_call_operand.vmem [shape: f32[1,128], index: 2, kind: input, shape index: {}]
  %s3 = inlined_call_operand.vmem [shape: bf16[512,128], index: 3, kind: input, shape index: {}]
  %s4 = inlined_call_operand.vmem [shape: f32[1,128], index: 4, kind: input, shape index: {}]
  %s5 = inlined_call_operand.vmem [shape: bf16[128,128], index: 5, kind: input, shape index: {}]
  %s6 = inlined_call_operand.vmem [shape: f32[1,128], index: 6, kind: input, shape index: {}]
  %s7 = inlined_call_operand.hbm [shape: f32[8,8,128], index: 7, kind: output, shape index: {}]
  %s8 = sld [smem:[#allocation0]]
  $region61: #{tpu_custom_call.1} parent=0
    _
  %s10 = ssub.s32 1, %s8
  %s11 = scalar_select 0, %s10, %s8
  $region1: #{tpu_custom_call.1} parent=0
    #allocation3 [shape = 'u8[32768]{0}', space=vmem, size = 0x8000, scoped, tag = 'output window, operand 0']
    #allocation4 [shape = 's32[2]{0}', space=sflag, size = 0x8, scoped, tag = 'scoped memory for tpu_custom_call.1']
    %12 = vsyncpa [#allocation4], 0
    %s13 = scalar_lea.sflag [#allocation4], 1
    %14 = vsyncpa %s13, 0
    loop: start=0, step=1, limit=4
    $region2: #{tpu_custom_call.1} parent=1 // loop_pre_header
      _
    $region3: #{tpu_custom_call.1} parent=1 // loop_header
      %s16 = sphi 0, %s20
      %p17 = scmp.ge.s32.totalorder %s16, 4
      %s26 = sphi 0, %s28
      %s29 = sphi 0, %s26
      %s30 = sphi 0, %s29
      %s46 = sphi 0, %s30
      %s50 = sphi 0, %s50
      %s52 = sphi 0, %s50
      %s53 = sphi 0, %s52
      %s67 = sphi 0, %s53
      %s71 = sphi 0, %s71
      %s73 = sphi 0, %s71
      %s74 = sphi 0, %s73
      %s88 = sphi 0, %s74
      %s92 = sphi 0, %s92
      %s94 = sphi 0, %s92
      %s95 = sphi 0, %s94
      %s109 = sphi 0, %s95
      %s113 = sphi 0, %s113
      %s115 = sphi 0, %s113
      %s116 = sphi 0, %s115
      %s130 = sphi 0, %s116
      %s134 = sphi 0, %s134
      %s136 = sphi 0, %s134
      %s137 = sphi 0, %s136
      %s151 = sphi 0, %s137
      %s155 = sphi 0, %s155
      %s157 = sphi 0, %s155
      %s158 = sphi 0, %s157
      %s172 = sphi 0, %s158
      %s178 = sphi 0, %s180
      %s181 = sphi 0, %s178
      %s182 = sphi 0, %s181
      %s198 = sphi 0, %s182
    $region4: #{tpu_custom_call.1} parent=1 // loop_header_branch
      %19 = sbr.rel (%p17) target = $region8
    $region5: #{tpu_custom_call.1} parent=1 // loop_body
      %s21 = ssub.s32 %s16, 1
      %s22 = ssub.s32 %s16, 2
      %s23 = sadd.s32 %s16, 1
      %s24 = ssub.s32 %s16, %s23
      %p25 = scmp.eq.s32.totalorder %s24, 0
      %s27 = sadd.s32 %s26, 1
      %s28 = scalar_select %p25, %s26, %s27
      %p31 = pneg %p25
      %p32 = scmp.eq.s32.totalorder %s16, 1
      %p33 = por %p31, %p32
      %p34 = scmp.ne.s32.totalorder %s26, %s29
      %p35 = scmp.eq.s32.totalorder %s16, 0
      %p36 = por %p34, %p35
      %p37 = scmp.ne.s32.totalorder %s26, %s29
      %p38 = scmp.eq.s32.totalorder %s21, 1
      %p39 = por %p37, %p38
      %p40 = scmp.ne.s32.totalorder %s29, %s30
      %p41 = scmp.eq.s32.totalorder %s21, 0
      %p42 = por %p40, %p41
      %p43 = scmp.ne.s32.totalorder %s29, %s30
      %p44 = scmp.eq.s32.totalorder %s22, 1
      %p45 = por %p43, %p44
      %p47 = scmp.ne.s32.totalorder %s30, %s46
      %p48 = scmp.eq.s32.totalorder %s22, 0
      %p49 = por %p47, %p48
      %s51 = sadd.s32 %s50, 1
      %p54 = scmp.eq.s32.totalorder %s16, 1
      %p55 = scmp.ne.s32.totalorder %s50, %s52
      %p56 = scmp.eq.s32.totalorder %s16, 0
      %p57 = por %p55, %p56
      %p58 = scmp.ne.s32.totalorder %s50, %s52
      %p59 = scmp.eq.s32.totalorder %s21, 1
      %p60 = por %p58, %p59
      %p61 = scmp.ne.s32.totalorder %s52, %s53
      %p62 = scmp.eq.s32.totalorder %s21, 0
      %p63 = por %p61, %p62
      %p64 = scmp.ne.s32.totalorder %s52, %s53
      %p65 = scmp.eq.s32.totalorder %s22, 1
      %p66 = por %p64, %p65
      %p68 = scmp.ne.s32.totalorder %s53, %s67
      %p69 = scmp.eq.s32.totalorder %s22, 0
      %p70 = por %p68, %p69
      %s72 = sadd.s32 %s71, 1
      %p75 = scmp.eq.s32.totalorder %s16, 1
      %p76 = scmp.ne.s32.totalorder %s71, %s73
      %p77 = scmp.eq.s32.totalorder %s16, 0
      %p78 = por %p76, %p77
      %p79 = scmp.ne.s32.totalorder %s71, %s73
      %p80 = scmp.eq.s32.totalorder %s21, 1
      %p81 = por %p79, %p80
      %p82 = scmp.ne.s32.totalorder %s73, %s74
      %p83 = scmp.eq.s32.totalorder %s21, 0
      %p84 = por %p82, %p83
      %p85 = scmp.ne.s32.totalorder %s73, %s74
      %p86 = scmp.eq.s32.totalorder %s22, 1
      %p87 = por %p85, %p86
      %p89 = scmp.ne.s32.totalorder %s74, %s88
      %p90 = scmp.eq.s32.totalorder %s22, 0
      %p91 = por %p89, %p90
      %s93 = sadd.s32 %s92, 1
      %p96 = scmp.eq.s32.totalorder %s16, 1
      %p97 = scmp.ne.s32.totalorder %s92, %s94
      %p98 = scmp.eq.s32.totalorder %s16, 0
      %p99 = por %p97, %p98
      %p100 = scmp.ne.s32.totalorder %s92, %s94
      %p101 = scmp.eq.s32.totalorder %s21, 1
      %p102 = por %p100, %p101
      %p103 = scmp.ne.s32.totalorder %s94, %s95
      %p104 = scmp.eq.s32.totalorder %s21, 0
      %p105 = por %p103, %p104
      %p106 = scmp.ne.s32.totalorder %s94, %s95
      %p107 = scmp.eq.s32.totalorder %s22, 1
      %p108 = por %p106, %p107
      %p110 = scmp.ne.s32.totalorder %s95, %s109
      %p111 = scmp.eq.s32.totalorder %s22, 0
      %p112 = por %p110, %p111
      %s114 = sadd.s32 %s113, 1
      %p117 = scmp.eq.s32.totalorder %s16, 1
      %p118 = scmp.ne.s32.totalorder %s113, %s115
      %p119 = scmp.eq.s32.totalorder %s16, 0
      %p120 = por %p118, %p119
      %p121 = scmp.ne.s32.totalorder %s113, %s115
      %p122 = scmp.eq.s32.totalorder %s21, 1
      %p123 = por %p121, %p122
      %p124 = scmp.ne.s32.totalorder %s115, %s116
      %p125 = scmp.eq.s32.totalorder %s21, 0
      %p126 = por %p124, %p125
      %p127 = scmp.ne.s32.totalorder %s115, %s116
      %p128 = scmp.eq.s32.totalorder %s22, 1
      %p129 = por %p127, %p128
      %p131 = scmp.ne.s32.totalorder %s116, %s130
      %p132 = scmp.eq.s32.totalorder %s22, 0
      %p133 = por %p131, %p132
      %s135 = sadd.s32 %s134, 1
      %p138 = scmp.eq.s32.totalorder %s16, 1
      %p139 = scmp.ne.s32.totalorder %s134, %s136
      %p140 = scmp.eq.s32.totalorder %s16, 0
      %p141 = por %p139, %p140
      %p142 = scmp.ne.s32.totalorder %s134, %s136
      %p143 = scmp.eq.s32.totalorder %s21, 1
      %p144 = por %p142, %p143
      %p145 = scmp.ne.s32.totalorder %s136, %s137
      %p146 = scmp.eq.s32.totalorder %s21, 0
      %p147 = por %p145, %p146
      %p148 = scmp.ne.s32.totalorder %s136, %s137
      %p149 = scmp.eq.s32.totalorder %s22, 1
      %p150 = por %p148, %p149
      %p152 = scmp.ne.s32.totalorder %s137, %s151
      %p153 = scmp.eq.s32.totalorder %s22, 0
      %p154 = por %p152, %p153
      %s156 = sadd.s32 %s155, 1
      %p159 = scmp.eq.s32.totalorder %s16, 1
      %p160 = scmp.ne.s32.totalorder %s155, %s157
      %p161 = scmp.eq.s32.totalorder %s16, 0
      %p162 = por %p160, %p161
      %p163 = scmp.ne.s32.totalorder %s155, %s157
      %p164 = scmp.eq.s32.totalorder %s21, 1
      %p165 = por %p163, %p164
      %p166 = scmp.ne.s32.totalorder %s157, %s158
      %p167 = scmp.eq.s32.totalorder %s21, 0
      %p168 = por %p166, %p167
      %p169 = scmp.ne.s32.totalorder %s157, %s158
      %p170 = scmp.eq.s32.totalorder %s22, 1
      %p171 = por %p169, %p170
      %p173 = scmp.ne.s32.totalorder %s158, %s172
      %p174 = scmp.eq.s32.totalorder %s22, 0
      %p175 = por %p173, %p174
      %s176 = ssub.s32 %s16, %s23
      %p177 = scmp.eq.s32.totalorder %s176, 0
      %s179 = sadd.s32 %s178, 1
      %s180 = scalar_select %p177, %s178, %s179
      %p183 = pneg %p177
      %p184 = scmp.eq.s32.totalorder %s16, 1
      %p185 = por %p183, %p184
      %p186 = scmp.ne.s32.totalorder %s178, %s181
      %p187 = scmp.eq.s32.totalorder %s16, 0
      %p188 = por %p186, %p187
      %p189 = scmp.ne.s32.totalorder %s178, %s181
      %p190 = scmp.eq.s32.totalorder %s21, 1
      %p191 = por %p189, %p190
      %p192 = scmp.ne.s32.totalorder %s181, %s182
      %p193 = scmp.eq.s32.totalorder %s21, 0
      %p194 = por %p192, %p193
      %p195 = scmp.ne.s32.totalorder %s181, %s182
      %p196 = scmp.eq.s32.totalorder %s22, 1
      %p197 = por %p195, %p196
      %p199 = scmp.ne.s32.totalorder %s182, %s198
      %p200 = scmp.eq.s32.totalorder %s22, 0
      %p201 = por %p199, %p200
      %p202 = scmp.le.s32.totalorder 1, %s16
      %p203 = scmp.lt.s32.totalorder %s16, 3
      %p204 = pnand %p202, %p203
      %p205 = pneg %p204
      // Predicated region
      $region9: #{tpu_custom_call.1} parent=5 // pred_check
        _
      $region10: #{tpu_custom_call.1} parent=5 // pred_check_branch
        %207 = sbr.rel (%p204) target = $region12
      $region11: #{tpu_custom_call.1} parent=5 // pred_region
        %s208 = ssub.s32 %s16, 1
        // Predicated region
        $region13: #{tpu_custom_call.1} parent=11 // pred_check
          %p209 = pneg %p63
        $region14: #{tpu_custom_call.1} parent=11 // pred_check_branch
          %211 = sbr.rel (%p209) target = $region16
        $region15: #{tpu_custom_call.1} parent=11 // pred_region
          _
        $region16: #{tpu_custom_call.1} parent=11 // pred_fallthru
          _
        // Predicated region
        $region17: #{tpu_custom_call.1} parent=11 // pred_check
          %p212 = pneg %p84
        $region18: #{tpu_custom_call.1} parent=11 // pred_check_branch
          %214 = sbr.rel (%p212) target = $region20
        $region19: #{tpu_custom_call.1} parent=11 // pred_region
          _
        $region20: #{tpu_custom_call.1} parent=11 // pred_fallthru
          _
        // Predicated region
        $region21: #{tpu_custom_call.1} parent=11 // pred_check
          %p215 = pneg %p105
        $region22: #{tpu_custom_call.1} parent=11 // pred_check_branch
          %217 = sbr.rel (%p215) target = $region24
        $region23: #{tpu_custom_call.1} parent=11 // pred_region
          _
        $region24: #{tpu_custom_call.1} parent=11 // pred_fallthru
          _
        // Predicated region
        $region25: #{tpu_custom_call.1} parent=11 // pred_check
          %p218 = pneg %p126
        $region26: #{tpu_custom_call.1} parent=11 // pred_check_branch
          %220 = sbr.rel (%p218) target = $region28
        $region27: #{tpu_custom_call.1} parent=11 // pred_region
          _
        $region28: #{tpu_custom_call.1} parent=11 // pred_fallthru
          _
        // Predicated region
        $region29: #{tpu_custom_call.1} parent=11 // pred_check
          %p221 = pneg %p147
        $region30: #{tpu_custom_call.1} parent=11 // pred_check_branch
          %223 = sbr.rel (%p221) target = $region32
        $region31: #{tpu_custom_call.1} parent=11 // pred_region
          _
        $region32: #{tpu_custom_call.1} parent=11 // pred_fallthru
          _
        // Predicated region
        $region33: #{tpu_custom_call.1} parent=11 // pred_check
          %p224 = pneg %p168
        $region34: #{tpu_custom_call.1} parent=11 // pred_check_branch
          %226 = sbr.rel (%p224) target = $region36
        $region35: #{tpu_custom_call.1} parent=11 // pred_region
          _
        $region36: #{tpu_custom_call.1} parent=11 // pred_fallthru
          _
      $region12: #{tpu_custom_call.1} parent=5 // pred_fallthru
        _
      %p227 = scmp.lt.s32.totalorder %s16, 2
      // Predicated region
      $region37: #{tpu_custom_call.1} parent=5 // pred_check
        %p228 = pneg %p227
      $region38: #{tpu_custom_call.1} parent=5 // pred_check_branch
        %230 = sbr.rel (%p228) target = $region40
      $region39: #{tpu_custom_call.1} parent=5 // pred_region
        // Predicated region
        $region41: #{tpu_custom_call.1} parent=39 // pred_check
          %p231 = pneg %p36
        $region42: #{tpu_custom_call.1} parent=39 // pred_check_branch
          %233 = sbr.rel (%p231) target = $region44
        $region43: #{tpu_custom_call.1} parent=39 // pred_region
          %s234 = smul.u32 4, %s16
          %p235 = scmp.lt.s32.totalorder %s234, 7
          %s236 = scalar_select %p235, %s234, 7
          %s237 = smul.addr %s236, 5
          %s238 = smul.addr %s237, 8
          %s239 = scalar_lea.vmem %s0, %s238
          %s240 = smul.u32 4, %s16
        $region44: #{tpu_custom_call.1} parent=39 // pred_fallthru
          _
      $region40: #{tpu_custom_call.1} parent=5 // pred_fallthru
        _
      %p241 = scmp.le.s32.totalorder 1, %s16
      %p242 = scmp.lt.s32.totalorder %s16, 3
      %p243 = pnand %p241, %p242
      %p244 = pneg %p243
      // Predicated region
      $region45: #{tpu_custom_call.1} parent=5 // pred_check
        _
      $region46: #{tpu_custom_call.1} parent=5 // pred_check_branch
        %246 = sbr.rel (%p243) target = $region48
      $region47: #{tpu_custom_call.1} parent=5 // pred_region
        %s247 = ssub.s32 %s16, 1
        %s248 = smul.u32 4, %s21
        %p249 = scmp.lt.s32.totalorder %s248, 7
        %s250 = scalar_select %p249, %s248, 7
        %s251 = smul.addr %s250, 5
        %s252 = smul.addr %s251, 8
        %s253 = scalar_lea.vmem %s0, %s252
        %p254 = pneg %p42
        %p255 = pneg %p39
        %p256 = pneg %p63
        %p257 = pneg %p60
        %p258 = pneg %p84
        %p259 = pneg %p81
        %p260 = pneg %p105
        %p261 = pneg %p102
        %p262 = pneg %p126
        %p263 = pneg %p123
        %p264 = pneg %p147
        %p265 = pneg %p144
        %p266 = pneg %p168
        %p267 = pneg %p165
        %p268 = pneg %p194
        %p269 = pneg %p191
        %s270 = sand.u32 %s181, 1
        %s271 = scalar_lea.sflag [#allocation4], %s270
        %s272 = sand.u32 %s181, 1
        %s273 = smul.addr %s272, 32
        %s274 = scalar_lea.vmem [#allocation3], %s273
        %s275 = smul.u32 4, %s21
        %p276 = scmp.lt.s32.totalorder %s275, 7
        %s277 = scalar_select %p276, %s275, 7
        %s278 = smul.addr %s277, 5
        %s279 = smul.addr %s278, 8
        %s280 = scalar_lea.vmem %s0, %s279
        %s281 = smul.u32 4, %s21
        %s282 = smul.u32 4, %s21
        %v284 = vld [vmem:[%s280] ss:$2 sm:$0xff]
        %s285 = scalar_lea.vmem %s280, 16
        %v286 = vld [vmem:[%s285] ss:$2 sm:$0xff]
        %s287 = scalar_lea.vmem %s280, 40
        %v288 = vld [vmem:[%s287] ss:$2 sm:$0xff]
        %s289 = scalar_lea.vmem %s280, 56
        %v290 = vld [vmem:[%s289] ss:$2 sm:$0xff]
        %s291 = scalar_lea.vmem %s280, 80
        %v292 = vld [vmem:[%s291] ss:$2 sm:$0xff]
        %s293 = scalar_lea.vmem %s280, 96
        %v294 = vld [vmem:[%s293] ss:$2 sm:$0xff]
        %s295 = scalar_lea.vmem %s280, 120
        %v296 = vld [vmem:[%s295] ss:$2 sm:$0xff]
        %s297 = scalar_lea.vmem %s280, 136
        %v298 = vld [vmem:[%s297] ss:$2 sm:$0xff]
        %s299 = scalar_lea.vmem %s280, 1
        %v300 = vld [vmem:[%s299] ss:$2 sm:$0xff]
        %s301 = scalar_lea.vmem %s280, 17
        %v302 = vld [vmem:[%s301] ss:$2 sm:$0xff]
        %s303 = scalar_lea.vmem %s280, 41
        %v304 = vld [vmem:[%s303] ss:$2 sm:$0xff]
        %s305 = scalar_lea.vmem %s280, 57
        %v306 = vld [vmem:[%s305] ss:$2 sm:$0xff]
        %s307 = scalar_lea.vmem %s280, 81
        %v308 = vld [vmem:[%s307] ss:$2 sm:$0xff]
        %s309 = scalar_lea.vmem %s280, 97
        %v310 = vld [vmem:[%s309] ss:$2 sm:$0xff]
        %s311 = scalar_lea.vmem %s280, 121
        %v312 = vld [vmem:[%s311] ss:$2 sm:$0xff]
        %s313 = scalar_lea.vmem %s280, 137
        %v314 = vld [vmem:[%s313] ss:$2 sm:$0xff]
        %s315 = scalar_lea.vmem %s280, 2
        %v316 = vld [vmem:[%s315] ss:$2 sm:$0xff]
        %s317 = scalar_lea.vmem %s280, 18
        %v318 = vld [vmem:[%s317] ss:$2 sm:$0xff]
        %s319 = scalar_lea.vmem %s280, 42
        %v320 = vld [vmem:[%s319] ss:$2 sm:$0xff]
        %s321 = scalar_lea.vmem %s280, 58
        %v322 = vld [vmem:[%s321] ss:$2 sm:$0xff]
        %s323 = scalar_lea.vmem %s280, 82
        %v324 = vld [vmem:[%s323] ss:$2 sm:$0xff]
        %s325 = scalar_lea.vmem %s280, 98
        %v326 = vld [vmem:[%s325] ss:$2 sm:$0xff]
        %s327 = scalar_lea.vmem %s280, 122
        %v328 = vld [vmem:[%s327] ss:$2 sm:$0xff]
        %s329 = scalar_lea.vmem %s280, 138
        %v330 = vld [vmem:[%s329] ss:$2 sm:$0xff]
        %s331 = scalar_lea.vmem %s280, 3
        %v332 = vld [vmem:[%s331] ss:$2 sm:$0xff]
        %s333 = scalar_lea.vmem %s280, 19
        %v334 = vld [vmem:[%s333] ss:$2 sm:$0xff]
        %s335 = scalar_lea.vmem %s280, 43
        %v336 = vld [vmem:[%s335] ss:$2 sm:$0xff]
        %s337 = scalar_lea.vmem %s280, 59
        %v338 = vld [vmem:[%s337] ss:$2 sm:$0xff]
        %s339 = scalar_lea.vmem %s280, 83
        %v340 = vld [vmem:[%s339] ss:$2 sm:$0xff]
        %s341 = scalar_lea.vmem %s280, 99
        %v342 = vld [vmem:[%s341] ss:$2 sm:$0xff]
        %s343 = scalar_lea.vmem %s280, 123
        %v344 = vld [vmem:[%s343] ss:$2 sm:$0xff]
        %s345 = scalar_lea.vmem %s280, 139
        %v346 = vld [vmem:[%s345] ss:$2 sm:$0xff]
        %v347 = vpack.c.bf16 %v286, %v284
        %v348 = vpack.c.bf16 %v302, %v300
        %v349 = vpack.c.bf16 %v318, %v316
        %v350 = vpack.c.bf16 %v334, %v332
        %v351 = vpack.c.bf16 %v290, %v288
        %v352 = vpack.c.bf16 %v306, %v304
        %v353 = vpack.c.bf16 %v322, %v320
        %v354 = vpack.c.bf16 %v338, %v336
        %v355 = vpack.c.bf16 %v294, %v292
        %v356 = vpack.c.bf16 %v310, %v308
        %v357 = vpack.c.bf16 %v326, %v324
        %v358 = vpack.c.bf16 %v342, %v340
        %v359 = vpack.c.bf16 %v298, %v296
        %v360 = vpack.c.bf16 %v314, %v312
        %v361 = vpack.c.bf16 %v330, %v328
        %v362 = vpack.c.bf16 %v346, %v344
        %v363 = vld [vmem:[%s1] sm:$0xf]
        %v364 = vld [vmem:[%s1 + $0x4] sm:$0xf]
        %v365 = vld [vmem:[%s1 + $0x8] sm:$0xf]
        %v366 = vld [vmem:[%s1 + $0xc] sm:$0xf]
        %v367 = vld [vmem:[%s1 + $0x10] sm:$0xf]
        %v368 = vld [vmem:[%s1 + $0x14] sm:$0xf]
        %v369 = vld [vmem:[%s1 + $0x18] sm:$0xf]
        %v370 = vld [vmem:[%s1 + $0x1c] sm:$0xf]
        %v371 = vld [vmem:[%s1 + $0x20] sm:$0xf]
        %v372 = vld [vmem:[%s1 + $0x24] sm:$0xf]
        %v373 = vld [vmem:[%s1 + $0x28] sm:$0xf]
        %v374 = vld [vmem:[%s1 + $0x2c] sm:$0xf]
        %v375 = vld [vmem:[%s1 + $0x30] sm:$0xf]
        %v376 = vld [vmem:[%s1 + $0x34] sm:$0xf]
        %v377 = vld [vmem:[%s1 + $0x38] sm:$0xf]
        %v378 = vld [vmem:[%s1 + $0x3c] sm:$0xf]
        %v379 = vld [vmem:[%s1 + $0x40] sm:$0xf]
        %v380 = vld [vmem:[%s1 + $0x44] sm:$0xf]
        %v381 = vld [vmem:[%s1 + $0x48] sm:$0xf]
        %v382 = vld [vmem:[%s1 + $0x4c] sm:$0xf]
        %v383 = vld [vmem:[%s1 + $0x50] sm:$0xf]
        %v384 = vld [vmem:[%s1 + $0x54] sm:$0xf]
        %v385 = vld [vmem:[%s1 + $0x58] sm:$0xf]
        %v386 = vld [vmem:[%s1 + $0x5c] sm:$0xf]
        %v387 = vld [vmem:[%s1 + $0x60] sm:$0xf]
        %v388 = vld [vmem:[%s1 + $0x64] sm:$0xf]
        %v389 = vld [vmem:[%s1 + $0x68] sm:$0xf]
        %v390 = vld [vmem:[%s1 + $0x6c] sm:$0xf]
        %v391 = vld [vmem:[%s1 + $0x70] sm:$0xf]
        %v392 = vld [vmem:[%s1 + $0x74] sm:$0xf]
        %v393 = vld [vmem:[%s1 + $0x78] sm:$0xf]
        %v394 = vld [vmem:[%s1 + $0x7c] sm:$0xf]
        %v395 = vld [vmem:[%s1 + $0x80] sm:$0xf]
        %v396 = vld [vmem:[%s1 + $0x84] sm:$0xf]
        %v397 = vld [vmem:[%s1 + $0x88] sm:$0xf]
        %v398 = vld [vmem:[%s1 + $0x8c] sm:$0xf]
        %v399 = vld [vmem:[%s1 + $0x90] sm:$0xf]
        %v400 = vld [vmem:[%s1 + $0x94] sm:$0xf]
        %v401 = vld [vmem:[%s1 + $0x98] sm:$0xf]
        %v402 = vld [vmem:[%s1 + $0x9c] sm:$0xf]
        %v403 = vld [vmem:[%s1 + $0xa0] sm:$0xf]
        %v404 = vld [vmem:[%s1 + $0xa4] sm:$0xf]
        %v405 = vld [vmem:[%s1 + $0xa8] sm:$0xf]
        %v406 = vld [vmem:[%s1 + $0xac] sm:$0xf]
        %v407 = vld [vmem:[%s1 + $0xb0] sm:$0xf]
        %v408 = vld [vmem:[%s1 + $0xb4] sm:$0xf]
        %v409 = vld [vmem:[%s1 + $0xb8] sm:$0xf]
        %v410 = vld [vmem:[%s1 + $0xbc] sm:$0xf]
        %v411 = vld [vmem:[%s1 + $0xc0] sm:$0xf]
        %v412 = vld [vmem:[%s1 + $0xc4] sm:$0xf]
        %v413 = vld [vmem:[%s1 + $0xc8] sm:$0xf]
        %v414 = vld [vmem:[%s1 + $0xcc] sm:$0xf]
        %v415 = vld [vmem:[%s1 + $0xd0] sm:$0xf]
        %v416 = vld [vmem:[%s1 + $0xd4] sm:$0xf]
        %v417 = vld [vmem:[%s1 + $0xd8] sm:$0xf]
        %v418 = vld [vmem:[%s1 + $0xdc] sm:$0xf]
        %v419 = vld [vmem:[%s1 + $0xe0] sm:$0xf]
        %v420 = vld [vmem:[%s1 + $0xe4] sm:$0xf]
        %v421 = vld [vmem:[%s1 + $0xe8] sm:$0xf]
        %v422 = vld [vmem:[%s1 + $0xec] sm:$0xf]
        %v423 = vld [vmem:[%s1 + $0xf0] sm:$0xf]
        %v424 = vld [vmem:[%s1 + $0xf4] sm:$0xf]
        %v425 = vld [vmem:[%s1 + $0xf8] sm:$0xf]
        %v426 = vld [vmem:[%s1 + $0xfc] sm:$0xf]
        %v427 = vld [vmem:[%s2] sm:$0x1]
        %v429 = vlaneseq
        %v430 = vshrl.u32 %v429, 7
        %v431 = vsub.s32 0, %v430
        %v432 = vrot.slane %v427, %v431
        %v498 = vunpack.c.l.b16 %v363
        %v499 = vunpack.c.l.b16 %v364
        %v500 = vunpack.c.l.b16 %v365
        %v501 = vunpack.c.l.b16 %v366
        %v502 = vunpack.c.l.b16 %v367
        %v503 = vunpack.c.l.b16 %v368
        %v504 = vunpack.c.l.b16 %v369
        %v505 = vunpack.c.l.b16 %v370
        %v506 = vunpack.c.l.b16 %v371
        %v507 = vunpack.c.l.b16 %v372
        %v508 = vunpack.c.l.b16 %v373
        %v509 = vunpack.c.l.b16 %v374
        %v510 = vunpack.c.l.b16 %v375
        %v511 = vunpack.c.l.b16 %v376
        %v512 = vunpack.c.l.b16 %v377
        %v513 = vunpack.c.l.b16 %v378
        %v514 = vunpack.c.l.b16 %v379
        %v515 = vunpack.c.l.b16 %v380
        %v516 = vunpack.c.l.b16 %v381
        %v517 = vunpack.c.l.b16 %v382
        %v518 = vunpack.c.l.b16 %v383
        %v519 = vunpack.c.l.b16 %v384
        %v520 = vunpack.c.l.b16 %v385
        %v521 = vunpack.c.l.b16 %v386
        %v522 = vunpack.c.l.b16 %v387
        %v523 = vunpack.c.l.b16 %v388
        %v524 = vunpack.c.l.b16 %v389
        %v525 = vunpack.c.l.b16 %v390
        %v526 = vunpack.c.l.b16 %v391
        %v527 = vunpack.c.l.b16 %v392
        %v528 = vunpack.c.l.b16 %v393
        %v529 = vunpack.c.l.b16 %v394
        %v530 = vunpack.c.l.b16 %v395
        %v531 = vunpack.c.l.b16 %v396
        %v532 = vunpack.c.l.b16 %v397
        %v533 = vunpack.c.l.b16 %v398
        %v534 = vunpack.c.l.b16 %v399
        %v535 = vunpack.c.l.b16 %v400
        %v536 = vunpack.c.l.b16 %v401
        %v537 = vunpack.c.l.b16 %v402
        %v538 = vunpack.c.l.b16 %v403
        %v539 = vunpack.c.l.b16 %v404
        %v540 = vunpack.c.l.b16 %v405
        %v541 = vunpack.c.l.b16 %v406
        %v542 = vunpack.c.l.b16 %v407
        %v543 = vunpack.c.l.b16 %v408
        %v544 = vunpack.c.l.b16 %v409
        %v545 = vunpack.c.l.b16 %v410
        %v546 = vunpack.c.l.b16 %v411
        %v547 = vunpack.c.l.b16 %v412
        %v548 = vunpack.c.l.b16 %v413
        %v549 = vunpack.c.l.b16 %v414
        %v550 = vunpack.c.l.b16 %v415
        %v551 = vunpack.c.l.b16 %v416
        %v552 = vunpack.c.l.b16 %v417
        %v553 = vunpack.c.l.b16 %v418
        %v554 = vunpack.c.l.b16 %v419
        %v555 = vunpack.c.l.b16 %v420
        %v556 = vunpack.c.l.b16 %v421
        %v557 = vunpack.c.l.b16 %v422
        %v558 = vunpack.c.l.b16 %v423
        %v559 = vunpack.c.l.b16 %v424
        %v560 = vunpack.c.l.b16 %v425
        %v561 = vunpack.c.l.b16 %v426
        %v562 = vpack.c.b16 %v499, %v498
        %v563 = vpack.c.b16 %v501, %v500
        %v564 = vpack.c.b16 %v503, %v502
        %v565 = vpack.c.b16 %v505, %v504
        %v566 = vpack.c.b16 %v507, %v506
        %v567 = vpack.c.b16 %v509, %v508
        %v568 = vpack.c.b16 %v511, %v510
        %v569 = vpack.c.b16 %v513, %v512
        %v570 = vpack.c.b16 %v515, %v514
        %v571 = vpack.c.b16 %v517, %v516
        %v572 = vpack.c.b16 %v519, %v518
        %v573 = vpack.c.b16 %v521, %v520
        %v574 = vpack.c.b16 %v523, %v522
        %v575 = vpack.c.b16 %v525, %v524
        %v576 = vpack.c.b16 %v527, %v526
        %v577 = vpack.c.b16 %v529, %v528
        %v578 = vpack.c.b16 %v531, %v530
        %v579 = vpack.c.b16 %v533, %v532
        %v580 = vpack.c.b16 %v535, %v534
        %v581 = vpack.c.b16 %v537, %v536
        %v582 = vpack.c.b16 %v539, %v538
        %v583 = vpack.c.b16 %v541, %v540
        %v584 = vpack.c.b16 %v543, %v542
        %v585 = vpack.c.b16 %v545, %v544
        %v586 = vpack.c.b16 %v547, %v546
        %v587 = vpack.c.b16 %v549, %v548
        %v588 = vpack.c.b16 %v551, %v550
        %v589 = vpack.c.b16 %v553, %v552
        %v590 = vpack.c.b16 %v555, %v554
        %v591 = vpack.c.b16 %v557, %v556
        %v592 = vpack.c.b16 %v559, %v558
        %v593 = vpack.c.b16 %v561, %v560
        %626 = vmatprep.subr.bf16.mxu0 0
        %627 = vmatpush1.bf16.msra.mxu0 %v562
        %628 = vmatprep.subr.bf16.mxu0 0
        %629 = vmatpush1.bf16.msra.mxu0 %v563
        %630 = vmatprep.subr.bf16.mxu0 0
        %631 = vmatpush1.bf16.msra.mxu0 %v564
        %632 = vmatprep.subr.bf16.mxu0 0
        %633 = vmatpush1.bf16.msra.mxu0 %v565
        %634 = vmatprep.subr.bf16.mxu0 0
        %635 = vmatpush1.bf16.msra.mxu0 %v566
        %636 = vmatprep.subr.bf16.mxu0 0
        %637 = vmatpush1.bf16.msra.mxu0 %v567
        %638 = vmatprep.subr.bf16.mxu0 0
        %639 = vmatpush1.bf16.msra.mxu0 %v568
        %640 = vmatprep.subr.bf16.mxu0 0
        %641 = vmatpush1.bf16.msra.mxu0 %v569
        %642 = vmatprep.subr.bf16.mxu0 0
        %643 = vmatpush1.bf16.msra.mxu0 %v570
        %644 = vmatprep.subr.bf16.mxu0 0
        %645 = vmatpush1.bf16.msra.mxu0 %v571
        %646 = vmatprep.subr.bf16.mxu0 0
        %647 = vmatpush1.bf16.msra.mxu0 %v572
        %648 = vmatprep.subr.bf16.mxu0 0
        %649 = vmatpush1.bf16.msra.mxu0 %v573
        %650 = vmatprep.subr.bf16.mxu0 0
        %651 = vmatpush1.bf16.msra.mxu0 %v574
        %652 = vmatprep.subr.bf16.mxu0 0
        %653 = vmatpush1.bf16.msra.mxu0 %v575
        %654 = vmatprep.subr.bf16.mxu0 0
        %655 = vmatpush1.bf16.msra.mxu0 %v576
        %656 = vmatprep.subr.bf16.mxu0 0
        %657 = vmatpush1.bf16.msra.mxu0 %v577
        %658 = vmatprep.mubr.bf16.mxu0 %v348
        %659 = vmatmul.mubr.bf16.gmra.mrb[0].mxu0 %v347
        %v660 = vpop.f32.mrb[0].mxu0
        %v661 = vadd.f32 %v432, %v660
        %v662 = vpop.f32.mrb[0].mxu0
        %v663 = vpop.f32.mrb[0].mxu0
        %v664 = vadd.f32 %v432, %v663
        %v665 = vpop.f32.mrb[0].mxu0
        %666 = vmatprep.mubr.bf16.mxu0 %v352
        %667 = vmatmul.mubr.bf16.gmra.mrb[0].mxu0 %v351
        %v668 = vpop.f32.mrb[0].mxu0
        %v669 = vadd.f32 %v432, %v668
        %v670 = vpop.f32.mrb[0].mxu0
        %v671 = vpop.f32.mrb[0].mxu0
        %v672 = vadd.f32 %v432, %v671
        %v673 = vpop.f32.mrb[0].mxu0
        %674 = vmatprep.mubr.bf16.mxu0 %v356
        %675 = vmatmul.mubr.bf16.gmra.mrb[0].mxu0 %v355
        %v676 = vpop.f32.mrb[0].mxu0
        %v677 = vadd.f32 %v432, %v676
        %v678 = vpop.f32.mrb[0].mxu0
        %v679 = vpop.f32.mrb[0].mxu0
        %v680 = vadd.f32 %v432, %v679
        %v681 = vpop.f32.mrb[0].mxu0
        %682 = vmatprep.mubr.bf16.mxu0 %v360
        %683 = vmatmul.mubr.bf16.gmra.mrb[0].mxu0 %v359
        %v684 = vpop.f32.mrb[0].mxu0
        %v685 = vadd.f32 %v432, %v684
        %v686 = vpop.f32.mrb[0].mxu0
        %v687 = vpop.f32.mrb[0].mxu0
        %v688 = vadd.f32 %v432, %v687
        %v689 = vpop.f32.mrb[0].mxu0
        %690 = vdwg.mxu0
        %691 = vmatprep.subr.bf16.mxu0 0
        %692 = vmatpush1.bf16.msra.mxu0 %v578
        %693 = vmatprep.subr.bf16.mxu0 0
        %694 = vmatpush1.bf16.msra.mxu0 %v579
        %695 = vmatprep.subr.bf16.mxu0 0
        %696 = vmatpush1.bf16.msra.mxu0 %v580
        %697 = vmatprep.subr.bf16.mxu0 0
        %698 = vmatpush1.bf16.msra.mxu0 %v581
        %699 = vmatprep.subr.bf16.mxu0 0
        %700 = vmatpush1.bf16.msra.mxu0 %v582
        %701 = vmatprep.subr.bf16.mxu0 0
        %702 = vmatpush1.bf16.msra.mxu0 %v583
        %703 = vmatprep.subr.bf16.mxu0 0
        %704 = vmatpush1.bf16.msra.mxu0 %v584
        %705 = vmatprep.subr.bf16.mxu0 0
        %706 = vmatpush1.bf16.msra.mxu0 %v585
        %707 = vmatprep.subr.bf16.mxu0 0
        %708 = vmatpush1.bf16.msra.mxu0 %v586
        %709 = vmatprep.subr.bf16.mxu0 0
        %710 = vmatpush1.bf16.msra.mxu0 %v587
        %711 = vmatprep.subr.bf16.mxu0 0
        %712 = vmatpush1.bf16.msra.mxu0 %v588
        %713 = vmatprep.subr.bf16.mxu0 0
        %714 = vmatpush1.bf16.msra.mxu0 %v589
        %715 = vmatprep.subr.bf16.mxu0 0
        %716 = vmatpush1.bf16.msra.mxu0 %v590
        %717 = vmatprep.subr.bf16.mxu0 0
        %718 = vmatpush1.bf16.msra.mxu0 %v591
        %719 = vmatprep.subr.bf16.mxu0 0
        %720 = vmatpush1.bf16.msra.mxu0 %v592
        %721 = vmatprep.subr.bf16.mxu0 0
        %722 = vmatpush1.bf16.msra.mxu0 %v593
        %723 = vmatprep.mubr.bf16.mxu0 %v350
        %724 = vmatmul.mubr.bf16.gmra.mrb[0].mxu0 %v349
        %v725 = vpop.f32.mrb[0].mxu0
        %v726 = vadd.f32 %v661, %v725
        %v727 = vpop.f32.mrb[0].mxu0
        %v728 = vpop.f32.mrb[0].mxu0
        %v729 = vadd.f32 %v664, %v728
        %v730 = vpop.f32.mrb[0].mxu0
        %731 = vmatprep.mubr.bf16.mxu0 %v354
        %732 = vmatmul.mubr.bf16.gmra.mrb[0].mxu0 %v353
        %v733 = vpop.f32.mrb[0].mxu0
        %v734 = vadd.f32 %v669, %v733
        %v735 = vpop.f32.mrb[0].mxu0
        %v736 = vpop.f32.mrb[0].mxu0
        %v737 = vadd.f32 %v672, %v736
        %v738 = vpop.f32.mrb[0].mxu0
        %739 = vmatprep.mubr.bf16.mxu0 %v358
        %740 = vmatmul.mubr.bf16.gmra.mrb[0].mxu0 %v357
        %v741 = vpop.f32.mrb[0].mxu0
        %v742 = vadd.f32 %v677, %v741
        %v743 = vpop.f32.mrb[0].mxu0
        %v744 = vpop.f32.mrb[0].mxu0
        %v745 = vadd.f32 %v680, %v744
        %v746 = vpop.f32.mrb[0].mxu0
        %747 = vmatprep.mubr.bf16.mxu0 %v362
        %748 = vmatmul.mubr.bf16.gmra.mrb[0].mxu0 %v361
        %v749 = vpop.f32.mrb[0].mxu0
        %v750 = vadd.f32 %v685, %v749
        %v751 = vpop.f32.mrb[0].mxu0
        %v752 = vpop.f32.mrb[0].mxu0
        %v753 = vadd.f32 %v688, %v752
        %v754 = vpop.f32.mrb[0].mxu0
        %755 = vdwg.mxu0
        %vm756 = vcmp.ge.f32.partialorder %v726, 0.0
        %vm757 = vcmp.ge.f32.partialorder %v729, 0.0
        %vm758 = vcmp.ge.f32.partialorder %v734, 0.0
        %vm759 = vcmp.ge.f32.partialorder %v737, 0.0
        %vm760 = vcmp.ge.f32.partialorder %v742, 0.0
        %vm761 = vcmp.ge.f32.partialorder %v745, 0.0
        %vm762 = vcmp.ge.f32.partialorder %v750, 0.0
        %vm763 = vcmp.ge.f32.partialorder %v753, 0.0
        %v764 = vmul.f32 %v726, 0.2
        %v765 = vmul.f32 %v729, 0.2
        %v766 = vmul.f32 %v734, 0.2
        %v767 = vmul.f32 %v737, 0.2
        %v768 = vmul.f32 %v742, 0.2
        %v769 = vmul.f32 %v745, 0.2
        %v770 = vmul.f32 %v750, 0.2
        %v771 = vmul.f32 %v753, 0.2
        %v772 = vsel %vm756, %v726, %v764
        %v773 = vsel %vm757, %v729, %v765
        %v774 = vsel %vm758, %v734, %v766
        %v775 = vsel %vm759, %v737, %v767
        %v776 = vsel %vm760, %v742, %v768
        %v777 = vsel %vm761, %v745, %v769
        %v778 = vsel %vm762, %v750, %v770
        %v779 = vsel %vm763, %v753, %v771
        %780 = vst [vmem:[#allocation2 + $0x7] sm:$0x1] 0.0
        %781 = vst [vmem:[#allocation2 + $0x27] sm:$0x1] 0.0
        %782 = vst [vmem:[#allocation2 + $0x47] sm:$0x1] 0.0
        %783 = vst [vmem:[#allocation2 + $0x67] sm:$0x1] 0.0
        %784 = vst [vmem:[#allocation2 + $0x18] sm:$0x1] 0.0
        %785 = vst [vmem:[#allocation2 + $0x38] sm:$0x1] 0.0
        %786 = vst [vmem:[#allocation2 + $0x58] sm:$0x1] 0.0
        %787 = vst [vmem:[#allocation2 + $0x78] sm:$0x1] 0.0
        %788 = vst [vmem:[#allocation2 + $0x8] sm:$0xff] %v772
        %789 = vst [vmem:[#allocation2 + $0x10] sm:$0xff] %v773
        %790 = vst [vmem:[#allocation2 + $0x28] sm:$0xff] %v774
        %791 = vst [vmem:[#allocation2 + $0x30] sm:$0xff] %v775
        %792 = vst [vmem:[#allocation2 + $0x48] sm:$0xff] %v776
        %793 = vst [vmem:[#allocation2 + $0x50] sm:$0xff] %v777
        %794 = vst [vmem:[#allocation2 + $0x68] sm:$0xff] %v778
        %795 = vst [vmem:[#allocation2 + $0x70] sm:$0xff] %v779
        %s796 = scalar_lea.vmem [#allocation2], 7
        %v797 = vld [vmem:[%s796] ss:$2 sm:$0xff]
        %s798 = scalar_lea.vmem [#allocation2], 39
        %v799 = vld [vmem:[%s798] ss:$2 sm:$0xff]
        %s800 = scalar_lea.vmem [#allocation2], 71
        %v801 = vld [vmem:[%s800] ss:$2 sm:$0xff]
        %s802 = scalar_lea.vmem [#allocation2], 103
        %v803 = vld [vmem:[%s802] ss:$2 sm:$0xff]
        %s804 = scalar_lea.vmem [#allocation2], 8
        %v805 = vld [vmem:[%s804] ss:$2 sm:$0xff]
        %s806 = scalar_lea.vmem [#allocation2], 40
        %v807 = vld [vmem:[%s806] ss:$2 sm:$0xff]
        %s808 = scalar_lea.vmem [#allocation2], 72
        %v809 = vld [vmem:[%s808] ss:$2 sm:$0xff]
        %s810 = scalar_lea.vmem [#allocation2], 104
        %v811 = vld [vmem:[%s810] ss:$2 sm:$0xff]
        %s812 = scalar_lea.vmem [#allocation2], 9
        %v813 = vld [vmem:[%s812] ss:$2 sm:$0xff]
        %s814 = scalar_lea.vmem [#allocation2], 41
        %v815 = vld [vmem:[%s814] ss:$2 sm:$0xff]
        %s816 = scalar_lea.vmem [#allocation2], 73
        %v817 = vld [vmem:[%s816] ss:$2 sm:$0xff]
        %s818 = scalar_lea.vmem [#allocation2], 105
        %v819 = vld [vmem:[%s818] ss:$2 sm:$0xff]
        %s820 = scalar_lea.vmem [#allocation2], 10
        %v821 = vld [vmem:[%s820] ss:$2 sm:$0xff]
        %s822 = scalar_lea.vmem [#allocation2], 42
        %v823 = vld [vmem:[%s822] ss:$2 sm:$0xff]
        %s824 = scalar_lea.vmem [#allocation2], 74
        %v825 = vld [vmem:[%s824] ss:$2 sm:$0xff]
        %s826 = scalar_lea.vmem [#allocation2], 106
        %v827 = vld [vmem:[%s826] ss:$2 sm:$0xff]
        %v828 = vpack.c.bf16 %v799, %v797
        %v829 = vpack.c.bf16 %v807, %v805
        %v830 = vpack.c.bf16 %v815, %v813
        %v831 = vpack.c.bf16 %v823, %v821
        %v832 = vpack.c.bf16 %v803, %v801
        %v833 = vpack.c.bf16 %v811, %v809
        %v834 = vpack.c.bf16 %v819, %v817
        %v835 = vpack.c.bf16 %v827, %v825
        %v836 = vld [vmem:[%s3] sm:$0xf]
        %v837 = vld [vmem:[%s3 + $0x4] sm:$0xf]
        %v838 = vld [vmem:[%s3 + $0x8] sm:$0xf]
        %v839 = vld [vmem:[%s3 + $0xc] sm:$0xf]
        %v840 = vld [vmem:[%s3 + $0x10] sm:$0xf]
        %v841 = vld [vmem:[%s3 + $0x14] sm:$0xf]
        %v842 = vld [vmem:[%s3 + $0x18] sm:$0xf]
        %v843 = vld [vmem:[%s3 + $0x1c] sm:$0xf]
        %v844 = vld [vmem:[%s3 + $0x20] sm:$0xf]
        %v845 = vld [vmem:[%s3 + $0x24] sm:$0xf]
        %v846 = vld [vmem:[%s3 + $0x28] sm:$0xf]
        %v847 = vld [vmem:[%s3 + $0x2c] sm:$0xf]
        %v848 = vld [vmem:[%s3 + $0x30] sm:$0xf]
        %v849 = vld [vmem:[%s3 + $0x34] sm:$0xf]
        %v850 = vld [vmem:[%s3 + $0x38] sm:$0xf]
        %v851 = vld [vmem:[%s3 + $0x3c] sm:$0xf]
        %v852 = vld [vmem:[%s3 + $0x40] sm:$0xf]
        %v853 = vld [vmem:[%s3 + $0x44] sm:$0xf]
        %v854 = vld [vmem:[%s3 + $0x48] sm:$0xf]
        %v855 = vld [vmem:[%s3 + $0x4c] sm:$0xf]
        %v856 = vld [vmem:[%s3 + $0x50] sm:$0xf]
        %v857 = vld [vmem:[%s3 + $0x54] sm:$0xf]
        %v858 = vld [vmem:[%s3 + $0x58] sm:$0xf]
        %v859 = vld [vmem:[%s3 + $0x5c] sm:$0xf]
        %v860 = vld [vmem:[%s3 + $0x60] sm:$0xf]
        %v861 = vld [vmem:[%s3 + $0x64] sm:$0xf]
        %v862 = vld [vmem:[%s3 + $0x68] sm:$0xf]
        %v863 = vld [vmem:[%s3 + $0x6c] sm:$0xf]
        %v864 = vld [vmem:[%s3 + $0x70] sm:$0xf]
        %v865 = vld [vmem:[%s3 + $0x74] sm:$0xf]
        %v866 = vld [vmem:[%s3 + $0x78] sm:$0xf]
        %v867 = vld [vmem:[%s3 + $0x7c] sm:$0xf]
        %v868 = vld [vmem:[%s3 + $0x80] sm:$0xf]
        %v869 = vld [vmem:[%s3 + $0x84] sm:$0xf]
        %v870 = vld [vmem:[%s3 + $0x88] sm:$0xf]
        %v871 = vld [vmem:[%s3 + $0x8c] sm:$0xf]
        %v872 = vld [vmem:[%s3 + $0x90] sm:$0xf]
        %v873 = vld [vmem:[%s3 + $0x94] sm:$0xf]
        %v874 = vld [vmem:[%s3 + $0x98] sm:$0xf]
        %v875 = vld [vmem:[%s3 + $0x9c] sm:$0xf]
        %v876 = vld [vmem:[%s3 + $0xa0] sm:$0xf]
        %v877 = vld [vmem:[%s3 + $0xa4] sm:$0xf]
        %v878 = vld [vmem:[%s3 + $0xa8] sm:$0xf]
        %v879 = vld [vmem:[%s3 + $0xac] sm:$0xf]
        %v880 = vld [vmem:[%s3 + $0xb0] sm:$0xf]
        %v881 = vld [vmem:[%s3 + $0xb4] sm:$0xf]
        %v882 = vld [vmem:[%s3 + $0xb8] sm:$0xf]
        %v883 = vld [vmem:[%s3 + $0xbc] sm:$0xf]
        %v884 = vld [vmem:[%s3 + $0xc0] sm:$0xf]
        %v885 = vld [vmem:[%s3 + $0xc4] sm:$0xf]
        %v886 = vld [vmem:[%s3 + $0xc8] sm:$0xf]
        %v887 = vld [vmem:[%s3 + $0xcc] sm:$0xf]
        %v888 = vld [vmem:[%s3 + $0xd0] sm:$0xf]
        %v889 = vld [vmem:[%s3 + $0xd4] sm:$0xf]
        %v890 = vld [vmem:[%s3 + $0xd8] sm:$0xf]
        %v891 = vld [vmem:[%s3 + $0xdc] sm:$0xf]
        %v892 = vld [vmem:[%s3 + $0xe0] sm:$0xf]
        %v893 = vld [vmem:[%s3 + $0xe4] sm:$0xf]
        %v894 = vld [vmem:[%s3 + $0xe8] sm:$0xf]
        %v895 = vld [vmem:[%s3 + $0xec] sm:$0xf]
        %v896 = vld [vmem:[%s3 + $0xf0] sm:$0xf]
        %v897 = vld [vmem:[%s3 + $0xf4] sm:$0xf]
        %v898 = vld [vmem:[%s3 + $0xf8] sm:$0xf]
        %v899 = vld [vmem:[%s3 + $0xfc] sm:$0xf]
        %v900 = vld [vmem:[%s4] sm:$0x1]
        %v902 = vlaneseq
        %v903 = vshrl.u32 %v902, 7
        %v904 = vsub.s32 0, %v903
        %v905 = vrot.slane %v900, %v904
        %v971 = vunpack.c.l.b16 %v836
        %v972 = vunpack.c.l.b16 %v837
        %v973 = vunpack.c.l.b16 %v838
        %v974 = vunpack.c.l.b16 %v839
        %v975 = vunpack.c.l.b16 %v840
        %v976 = vunpack.c.l.b16 %v841
        %v977 = vunpack.c.l.b16 %v842
        %v978 = vunpack.c.l.b16 %v843
        %v979 = vunpack.c.l.b16 %v844
        %v980 = vunpack.c.l.b16 %v845
        %v981 = vunpack.c.l.b16 %v846
        %v982 = vunpack.c.l.b16 %v847
        %v983 = vunpack.c.l.b16 %v848
        %v984 = vunpack.c.l.b16 %v849
        %v985 = vunpack.c.l.b16 %v850
        %v986 = vunpack.c.l.b16 %v851
        %v987 = vunpack.c.l.b16 %v852
        %v988 = vunpack.c.l.b16 %v853
        %v989 = vunpack.c.l.b16 %v854
        %v990 = vunpack.c.l.b16 %v855
        %v991 = vunpack.c.l.b16 %v856
        %v992 = vunpack.c.l.b16 %v857
        %v993 = vunpack.c.l.b16 %v858
        %v994 = vunpack.c.l.b16 %v859
        %v995 = vunpack.c.l.b16 %v860
        %v996 = vunpack.c.l.b16 %v861
        %v997 = vunpack.c.l.b16 %v862
        %v998 = vunpack.c.l.b16 %v863
        %v999 = vunpack.c.l.b16 %v864
        %v1000 = vunpack.c.l.b16 %v865
        %v1001 = vunpack.c.l.b16 %v866
        %v1002 = vunpack.c.l.b16 %v867
        %v1003 = vunpack.c.l.b16 %v868
        %v1004 = vunpack.c.l.b16 %v869
        %v1005 = vunpack.c.l.b16 %v870
        %v1006 = vunpack.c.l.b16 %v871
        %v1007 = vunpack.c.l.b16 %v872
        %v1008 = vunpack.c.l.b16 %v873
        %v1009 = vunpack.c.l.b16 %v874
        %v1010 = vunpack.c.l.b16 %v875
        %v1011 = vunpack.c.l.b16 %v876
        %v1012 = vunpack.c.l.b16 %v877
        %v1013 = vunpack.c.l.b16 %v878
        %v1014 = vunpack.c.l.b16 %v879
        %v1015 = vunpack.c.l.b16 %v880
        %v1016 = vunpack.c.l.b16 %v881
        %v1017 = vunpack.c.l.b16 %v882
        %v1018 = vunpack.c.l.b16 %v883
        %v1019 = vunpack.c.l.b16 %v884
        %v1020 = vunpack.c.l.b16 %v885
        %v1021 = vunpack.c.l.b16 %v886
        %v1022 = vunpack.c.l.b16 %v887
        %v1023 = vunpack.c.l.b16 %v888
        %v1024 = vunpack.c.l.b16 %v889
        %v1025 = vunpack.c.l.b16 %v890
        %v1026 = vunpack.c.l.b16 %v891
        %v1027 = vunpack.c.l.b16 %v892
        %v1028 = vunpack.c.l.b16 %v893
        %v1029 = vunpack.c.l.b16 %v894
        %v1030 = vunpack.c.l.b16 %v895
        %v1031 = vunpack.c.l.b16 %v896
        %v1032 = vunpack.c.l.b16 %v897
        %v1033 = vunpack.c.l.b16 %v898
        %v1034 = vunpack.c.l.b16 %v899
        %v1035 = vpack.c.b16 %v972, %v971
        %v1036 = vpack.c.b16 %v974, %v973
        %v1037 = vpack.c.b16 %v976, %v975
        %v1038 = vpack.c.b16 %v978, %v977
        %v1039 = vpack.c.b16 %v980, %v979
        %v1040 = vpack.c.b16 %v982, %v981
        %v1041 = vpack.c.b16 %v984, %v983
        %v1042 = vpack.c.b16 %v986, %v985
        %v1043 = vpack.c.b16 %v988, %v987
        %v1044 = vpack.c.b16 %v990, %v989
        %v1045 = vpack.c.b16 %v992, %v991
        %v1046 = vpack.c.b16 %v994, %v993
        %v1047 = vpack.c.b16 %v996, %v995
        %v1048 = vpack.c.b16 %v998, %v997
        %v1049 = vpack.c.b16 %v1000, %v999
        %v1050 = vpack.c.b16 %v1002, %v1001
        %v1051 = vpack.c.b16 %v1004, %v1003
        %v1052 = vpack.c.b16 %v1006, %v1005
        %v1053 = vpack.c.b16 %v1008, %v1007
        %v1054 = vpack.c.b16 %v1010, %v1009
        %v1055 = vpack.c.b16 %v1012, %v1011
        %v1056 = vpack.c.b16 %v1014, %v1013
        %v1057 = vpack.c.b16 %v1016, %v1015
        %v1058 = vpack.c.b16 %v1018, %v1017
        %v1059 = vpack.c.b16 %v1020, %v1019
        %v1060 = vpack.c.b16 %v1022, %v1021
        %v1061 = vpack.c.b16 %v1024, %v1023
        %v1062 = vpack.c.b16 %v1026, %v1025
        %v1063 = vpack.c.b16 %v1028, %v1027
        %v1064 = vpack.c.b16 %v1030, %v1029
        %v1065 = vpack.c.b16 %v1032, %v1031
        %v1066 = vpack.c.b16 %v1034, %v1033
        %1099 = vmatprep.subr.bf16.mxu0 0
        %1100 = vmatpush1.bf16.msra.mxu0 %v1035
        %1101 = vmatprep.subr.bf16.mxu0 0
        %1102 = vmatpush1.bf16.msra.mxu0 %v1036
        %1103 = vmatprep.subr.bf16.mxu0 0
        %1104 = vmatpush1.bf16.msra.mxu0 %v1037
        %1105 = vmatprep.subr.bf16.mxu0 0
        %1106 = vmatpush1.bf16.msra.mxu0 %v1038
        %1107 = vmatprep.subr.bf16.mxu0 0
        %1108 = vmatpush1.bf16.msra.mxu0 %v1039
        %1109 = vmatprep.subr.bf16.mxu0 0
        %1110 = vmatpush1.bf16.msra.mxu0 %v1040
        %1111 = vmatprep.subr.bf16.mxu0 0
        %1112 = vmatpush1.bf16.msra.mxu0 %v1041
        %1113 = vmatprep.subr.bf16.mxu0 0
        %1114 = vmatpush1.bf16.msra.mxu0 %v1042
        %1115 = vmatprep.subr.bf16.mxu0 0
        %1116 = vmatpush1.bf16.msra.mxu0 %v1043
        %1117 = vmatprep.subr.bf16.mxu0 0
        %1118 = vmatpush1.bf16.msra.mxu0 %v1044
        %1119 = vmatprep.subr.bf16.mxu0 0
        %1120 = vmatpush1.bf16.msra.mxu0 %v1045
        %1121 = vmatprep.subr.bf16.mxu0 0
        %1122 = vmatpush1.bf16.msra.mxu0 %v1046
        %1123 = vmatprep.subr.bf16.mxu0 0
        %1124 = vmatpush1.bf16.msra.mxu0 %v1047
        %1125 = vmatprep.subr.bf16.mxu0 0
        %1126 = vmatpush1.bf16.msra.mxu0 %v1048
        %1127 = vmatprep.subr.bf16.mxu0 0
        %1128 = vmatpush1.bf16.msra.mxu0 %v1049
        %1129 = vmatprep.subr.bf16.mxu0 0
        %1130 = vmatpush1.bf16.msra.mxu0 %v1050
        %1131 = vmatprep.mubr.bf16.mxu0 %v829
        %1132 = vmatmul.mubr.bf16.gmra.mrb[0].mxu0 %v828
        %v1133 = vpop.f32.mrb[0].mxu0
        %v1134 = vadd.f32 %v905, %v1133
        %v1135 = vpop.f32.mrb[0].mxu0
        %v1136 = vpop.f32.mrb[0].mxu0
        %v1137 = vadd.f32 %v905, %v1136
        %v1138 = vpop.f32.mrb[0].mxu0
        %1139 = vmatprep.mubr.bf16.mxu0 %v833
        %1140 = vmatmul.mubr.bf16.gmra.mrb[0].mxu0 %v832
        %v1141 = vpop.f32.mrb[0].mxu0
        %v1142 = vadd.f32 %v905, %v1141
        %v1143 = vpop.f32.mrb[0].mxu0
        %v1144 = vpop.f32.mrb[0].mxu0
        %v1145 = vadd.f32 %v905, %v1144
        %v1146 = vpop.f32.mrb[0].mxu0
        %1147 = vdwg.mxu0
        %1148 = vmatprep.subr.bf16.mxu0 0
        %1149 = vmatpush1.bf16.msra.mxu0 %v1051
        %1150 = vmatprep.subr.bf16.mxu0 0
        %1151 = vmatpush1.bf16.msra.mxu0 %v1052
        %1152 = vmatprep.subr.bf16.mxu0 0
        %1153 = vmatpush1.bf16.msra.mxu0 %v1053
        %1154 = vmatprep.subr.bf16.mxu0 0
        %1155 = vmatpush1.bf16.msra.mxu0 %v1054
        %1156 = vmatprep.subr.bf16.mxu0 0
        %1157 = vmatpush1.bf16.msra.mxu0 %v1055
        %1158 = vmatprep.subr.bf16.mxu0 0
        %1159 = vmatpush1.bf16.msra.mxu0 %v1056
        %1160 = vmatprep.subr.bf16.mxu0 0
        %1161 = vmatpush1.bf16.msra.mxu0 %v1057
        %1162 = vmatprep.subr.bf16.mxu0 0
        %1163 = vmatpush1.bf16.msra.mxu0 %v1058
        %1164 = vmatprep.subr.bf16.mxu0 0
        %1165 = vmatpush1.bf16.msra.mxu0 %v1059
        %1166 = vmatprep.subr.bf16.mxu0 0
        %1167 = vmatpush1.bf16.msra.mxu0 %v1060
        %1168 = vmatprep.subr.bf16.mxu0 0
        %1169 = vmatpush1.bf16.msra.mxu0 %v1061
        %1170 = vmatprep.subr.bf16.mxu0 0
        %1171 = vmatpush1.bf16.msra.mxu0 %v1062
        %1172 = vmatprep.subr.bf16.mxu0 0
        %1173 = vmatpush1.bf16.msra.mxu0 %v1063
        %1174 = vmatprep.subr.bf16.mxu0 0
        %1175 = vmatpush1.bf16.msra.mxu0 %v1064
        %1176 = vmatprep.subr.bf16.mxu0 0
        %1177 = vmatpush1.bf16.msra.mxu0 %v1065
        %1178 = vmatprep.subr.bf16.mxu0 0
        %1179 = vmatpush1.bf16.msra.mxu0 %v1066
        %1180 = vmatprep.mubr.bf16.mxu0 %v831
        %1181 = vmatmul.mubr.bf16.gmra.mrb[0].mxu0 %v830
        %v1182 = vpop.f32.mrb[0].mxu0
        %v1183 = vadd.f32 %v1134, %v1182
        %v1184 = vpop.f32.mrb[0].mxu0
        %v1185 = vpop.f32.mrb[0].mxu0
        %v1186 = vadd.f32 %v1137, %v1185
        %v1187 = vpop.f32.mrb[0].mxu0
        %1188 = vmatprep.mubr.bf16.mxu0 %v835
        %1189 = vmatmul.mubr.bf16.gmra.mrb[0].mxu0 %v834
        %v1190 = vpop.f32.mrb[0].mxu0
        %v1191 = vadd.f32 %v1142, %v1190
        %v1192 = vpop.f32.mrb[0].mxu0
        %v1193 = vpop.f32.mrb[0].mxu0
        %v1194 = vadd.f32 %v1145, %v1193
        %v1195 = vpop.f32.mrb[0].mxu0
        %1196 = vdwg.mxu0
        %vm1197 = vcmp.ge.f32.partialorder %v1183, 0.0
        %vm1198 = vcmp.ge.f32.partialorder %v1186, 0.0
        %vm1199 = vcmp.ge.f32.partialorder %v1191, 0.0
        %vm1200 = vcmp.ge.f32.partialorder %v1194, 0.0
        %v1201 = vmul.f32 %v1183, 0.2
        %v1202 = vmul.f32 %v1186, 0.2
        %v1203 = vmul.f32 %v1191, 0.2
        %v1204 = vmul.f32 %v1194, 0.2
        %v1205 = vsel %vm1197, %v1183, %v1201
        %v1206 = vsel %vm1198, %v1186, %v1202
        %v1207 = vsel %vm1199, %v1191, %v1203
        %v1208 = vsel %vm1200, %v1194, %v1204
        %v1209 = vpack.c.bf16 %v1206, %v1205
        %v1210 = vpack.c.bf16 %v1208, %v1207
        %v1211 = vld [vmem:[%s5] sm:$0xf]
        %v1212 = vld [vmem:[%s5 + $0x4] sm:$0xf]
        %v1213 = vld [vmem:[%s5 + $0x8] sm:$0xf]
        %v1214 = vld [vmem:[%s5 + $0xc] sm:$0xf]
        %v1215 = vld [vmem:[%s5 + $0x10] sm:$0xf]
        %v1216 = vld [vmem:[%s5 + $0x14] sm:$0xf]
        %v1217 = vld [vmem:[%s5 + $0x18] sm:$0xf]
        %v1218 = vld [vmem:[%s5 + $0x1c] sm:$0xf]
        %v1219 = vld [vmem:[%s5 + $0x20] sm:$0xf]
        %v1220 = vld [vmem:[%s5 + $0x24] sm:$0xf]
        %v1221 = vld [vmem:[%s5 + $0x28] sm:$0xf]
        %v1222 = vld [vmem:[%s5 + $0x2c] sm:$0xf]
        %v1223 = vld [vmem:[%s5 + $0x30] sm:$0xf]
        %v1224 = vld [vmem:[%s5 + $0x34] sm:$0xf]
        %v1225 = vld [vmem:[%s5 + $0x38] sm:$0xf]
        %v1226 = vld [vmem:[%s5 + $0x3c] sm:$0xf]
        %v1227 = vld [vmem:[%s6] sm:$0x1]
        %v1229 = vlaneseq
        %v1230 = vshrl.u32 %v1229, 7
        %v1231 = vsub.s32 0, %v1230
        %v1232 = vrot.slane %v1227, %v1231
        %v1250 = vunpack.c.l.b16 %v1211
        %v1251 = vunpack.c.l.b16 %v1212
        %v1252 = vunpack.c.l.b16 %v1213
        %v1253 = vunpack.c.l.b16 %v1214
        %v1254 = vunpack.c.l.b16 %v1215
        %v1255 = vunpack.c.l.b16 %v1216
        %v1256 = vunpack.c.l.b16 %v1217
        %v1257 = vunpack.c.l.b16 %v1218
        %v1258 = vunpack.c.l.b16 %v1219
        %v1259 = vunpack.c.l.b16 %v1220
        %v1260 = vunpack.c.l.b16 %v1221
        %v1261 = vunpack.c.l.b16 %v1222
        %v1262 = vunpack.c.l.b16 %v1223
        %v1263 = vunpack.c.l.b16 %v1224
        %v1264 = vunpack.c.l.b16 %v1225
        %v1265 = vunpack.c.l.b16 %v1226
        %v1266 = vpack.c.b16 %v1251, %v1250
        %v1267 = vpack.c.b16 %v1253, %v1252
        %v1268 = vpack.c.b16 %v1255, %v1254
        %v1269 = vpack.c.b16 %v1257, %v1256
        %v1270 = vpack.c.b16 %v1259, %v1258
        %v1271 = vpack.c.b16 %v1261, %v1260
        %v1272 = vpack.c.b16 %v1263, %v1262
        %v1273 = vpack.c.b16 %v1265, %v1264
        %1282 = vmatprep.subr.bf16.mxu0 0
        %1283 = vmatpush1.bf16.msra.mxu0 %v1266
        %1284 = vmatprep.subr.bf16.mxu0 0
        %1285 = vmatpush1.bf16.msra.mxu0 %v1267
        %1286 = vmatprep.subr.bf16.mxu0 0
        %1287 = vmatpush1.bf16.msra.mxu0 %v1268
        %1288 = vmatprep.subr.bf16.mxu0 0
        %1289 = vmatpush1.bf16.msra.mxu0 %v1269
        %1290 = vmatprep.subr.bf16.mxu0 0
        %1291 = vmatpush1.bf16.msra.mxu0 %v1270
        %1292 = vmatprep.subr.bf16.mxu0 0
        %1293 = vmatpush1.bf16.msra.mxu0 %v1271
        %1294 = vmatprep.subr.bf16.mxu0 0
        %1295 = vmatpush1.bf16.msra.mxu0 %v1272
        %1296 = vmatprep.subr.bf16.mxu0 0
        %1297 = vmatpush1.bf16.msra.mxu0 %v1273
        %1298 = vmatprep.subr.bf16.mxu0 0
        %1299 = vmatpush1.bf16.msra.mxu0 0
        %1300 = vmatprep.subr.bf16.mxu0 0
        %1301 = vmatpush1.bf16.msra.mxu0 0
        %1302 = vmatprep.subr.bf16.mxu0 0
        %1303 = vmatpush1.bf16.msra.mxu0 0
        %1304 = vmatprep.subr.bf16.mxu0 0
        %1305 = vmatpush1.bf16.msra.mxu0 0
        %1306 = vmatprep.subr.bf16.mxu0 0
        %1307 = vmatpush1.bf16.msra.mxu0 0
        %1308 = vmatprep.subr.bf16.mxu0 0
        %1309 = vmatpush1.bf16.msra.mxu0 0
        %1310 = vmatprep.subr.bf16.mxu0 0
        %1311 = vmatpush1.bf16.msra.mxu0 0
        %1312 = vmatprep.subr.bf16.mxu0 0
        %1313 = vmatpush1.bf16.msra.mxu0 0
        %1314 = vmatprep.mubr.bf16.mxu0 0
        %1315 = vmatmul.mubr.bf16.gmra.mrb[0].mxu0 %v1209
        %v1316 = vpop.f32.mrb[0].mxu0
        %v1317 = vadd.f32 %v1232, %v1316
        %v1318 = vpop.f32.mrb[0].mxu0
        %v1319 = vpop.f32.mrb[0].mxu0
        %v1320 = vadd.f32 %v1232, %v1319
        %v1321 = vpop.f32.mrb[0].mxu0
        %1322 = vmatprep.mubr.bf16.mxu0 0
        %1323 = vmatmul.mubr.bf16.gmra.mrb[0].mxu0 %v1210
        %v1324 = vpop.f32.mrb[0].mxu0
        %v1325 = vadd.f32 %v1232, %v1324
        %v1326 = vpop.f32.mrb[0].mxu0
        %v1327 = vpop.f32.mrb[0].mxu0
        %v1328 = vadd.f32 %v1232, %v1327
        %v1329 = vpop.f32.mrb[0].mxu0
        %1330 = vdwg.mxu0
        %1331 = vst [vmem:[%s274] sm:$0xff] %v1317
        %1332 = vst [vmem:[%s274 + $0x8] sm:$0xff] %v1320
        %1333 = vst [vmem:[%s274 + $0x10] sm:$0xff] %v1325
        %1334 = vst [vmem:[%s274 + $0x18] sm:$0xff] %v1328
        %s1335 = sand.u32 %s181, 1
        %s1336 = scalar_lea.sflag [#allocation4], %s1335
        %s1337 = sand.u32 %s181, 1
        %s1338 = smul.addr %s1337, 32
        %s1339 = scalar_lea.vmem [#allocation3], %s1338
        // Predicated region
        $region49: #{tpu_custom_call.1} parent=47 // pred_check
          %p1340 = pneg %p191
        $region50: #{tpu_custom_call.1} parent=47 // pred_check_branch
          %1342 = sbr.rel (%p1340) target = $region52
        $region51: #{tpu_custom_call.1} parent=47 // pred_region
          %s1343 = smul.u32 4, %s21
          %s1345 = ssub.s32 512, 512
          %1346 = vsyncadd %s1336, %s1345
          %s1347 = smul.addr %s1343, 128
          %s1348 = scalar_lea.hbm %s7, %s1347
          %s1349 = sshll.u32 %s1339, 4
          %s1350 = int_to_ptr.vmem [resolvable:$true] %s1349
          %1355 = dma.vmem_to_hbm [thread:$0]  %s1350, 512, %s1348, %s1336, 128, 128, 8
        $region52: #{tpu_custom_call.1} parent=47 // pred_fallthru
          _
      $region48: #{tpu_custom_call.1} parent=5 // pred_fallthru
        _
      %p1356 = scmp.le.s32.totalorder 2, %s16
      // Predicated region
      $region53: #{tpu_custom_call.1} parent=5 // pred_check
        %p1357 = pneg %p1356
      $region54: #{tpu_custom_call.1} parent=5 // pred_check_branch
        %1359 = sbr.rel (%p1357) target = $region56
      $region55: #{tpu_custom_call.1} parent=5 // pred_region
        %s1360 = ssub.s32 %s16, 2
        // Predicated region
        $region57: #{tpu_custom_call.1} parent=55 // pred_check
          %p1361 = pneg %p197
        $region58: #{tpu_custom_call.1} parent=55 // pred_check_branch
          %1363 = sbr.rel (%p1361) target = $region60
        $region59: #{tpu_custom_call.1} parent=55 // pred_region
          %s1364 = sand.u32 %s182, 1
          %s1365 = scalar_lea.sflag [#allocation4], %s1364
          %s1366 = sand.u32 %s182, 1
          %s1367 = smul.addr %s1366, 32
          %s1368 = scalar_lea.vmem [#allocation3], %s1367
          %1369 = dma.done %s1365, 512
        $region60: #{tpu_custom_call.1} parent=55 // pred_fallthru
          _
      $region56: #{tpu_custom_call.1} parent=5 // pred_fallthru
        _
    $region6: #{tpu_custom_call.1} parent=1 // loop_footer
      %s20 = sadd.s32 1, %s16
    $region7: #{tpu_custom_call.1} parent=1 // loop_footer_branch
      %15 = sbr.rel target = $region3
    $region8: #{tpu_custom_call.1} parent=1 // loop_exit
      _
    %1370 = vsyncpa [#allocation4], 1
    %s1371 = scalar_lea.sflag [#allocation4], 1
    %1372 = vsyncpa %s1371, 1

</llo_original>
